<compile_context>
chip_gen: v6e
topology: v6e:2x2x1
jax: 0.10.0
libtpu: 0.0.40
codegen_flags: <defaults>
</compile_context>

<pallas_src>
import math

import jax
import jax.numpy as jnp
import numpy as np
from jax.experimental import pallas as pl
from jax.experimental.pallas import tpu as pltpu

BN_EPS = 1e-5


# ----------------------------------------------------------------------------
# Fused kernel (factory: n_separate / num_stage are static Python structure)
# ----------------------------------------------------------------------------
def _make_kernel(n_sep, num_stage):
    """Kernel refs: [x (n_sep,N,B*Fin), <params...>, out (n_sep,N,B*Fin)]."""

    def kernel(*refs):
        x_ref = refs[0]
        out_ref = refs[-1]
        it = iter(refs[1:-1])
        nxt = lambda: next(it)

        def gc_bn_tanh(act, att, w, sc, sh):
            # act: (N, B*F) lane-dense; w: block-diag kron(I_B, W); att: (N, N)
            s = jnp.dot(act, w[...], preferred_element_type=jnp.float32)
            y = jnp.dot(att[...], s, preferred_element_type=jnp.float32)
            return jnp.tanh(y * sc[...] + sh[...])       # folded bias + BN(eval) + tanh

        def gc_block(act, prm):
            a1, w1, s1, h1, a2, w2, s2, h2 = prm
            t = gc_bn_tanh(act, a1, w1, s1, h1)
            t = gc_bn_tanh(t, a2, w2, s2, h2)
            return t + act                                # residual

        # --- pre GraphConvolutions -------------------------------------------
        F = []
        for i in range(n_sep):
            att, w, sc, sh = nxt(), nxt(), nxt(), nxt()
            F.append(gc_bn_tanh(x_ref[i], att, w, sc, sh))

        # --- GC_module stages -------------------------------------------------
        for _ in range(num_stage):
            gcbs = [tuple(nxt() for _ in range(8)) for _ in range(n_sep)]
            convs = [tuple(nxt() for _ in range(4)) for _ in range(n_sep - 1)]
            y = [gc_block(F[0], gcbs[0])]
            for i in range(1, n_sep):
                wt, wb, sc, sh = convs[i - 1]
                # concat-free 1x1 conv: cat(F[i], y[i-1]) @ Wc  ==  F[i]@Wc_top + y[i-1]@Wc_bot
                conv = (jnp.dot(F[i], wt[...], preferred_element_type=jnp.float32)
                        + jnp.dot(y[i - 1], wb[...], preferred_element_type=jnp.float32))
                conv = jnp.tanh(conv * sc[...] + sh[...])
                y.append(gc_block(conv, gcbs[i]))
            F = y

        # --- post GraphConvolutions (no BN); output concat handled by layout --
        for i in range(n_sep):
            att, w, b = nxt(), nxt(), nxt()
            s = jnp.dot(F[i], w[...], preferred_element_type=jnp.float32)
            out_ref[i] = jnp.dot(att[...], s, preferred_element_type=jnp.float32) + b[...]

    return kernel


# ----------------------------------------------------------------------------
# Wrapper: parameter folding + lane-dense layout + single pallas_call
# ----------------------------------------------------------------------------
def _block_diag(w, B):
    # kron(I_B, W): applies W independently to each batch slot of the (N, B*F) slab.
    return jnp.kron(jnp.eye(B, dtype=w.dtype), w)


def _fold_bn(bn, bias, B):
    # BN(eval)(gc_out + bias) == gc_out * scale + shift
    scale = bn["g"] * jax.lax.rsqrt(bn["v"] + BN_EPS)          # (N, F)
    shift = (bias[None, :] - bn["m"]) * scale + bn["be"]       # (N, F)
    return jnp.tile(scale, (1, B)), jnp.tile(shift, (1, B))    # -> (N, B*F)


def _flatten_params(params, B):
    flat = []
    n_sep = len(params["pre"])
    for i in range(n_sep):
        p = params["pre"][i]
        sc, sh = _fold_bn(p["bn"], p["b"], B)
        flat += [p["att"], _block_diag(p["w"], B), sc, sh]
    for gm in params["gcms"]:
        for i in range(n_sep):
            g = gm["gcbs"][i]
            sc1, sh1 = _fold_bn(g["bn1"], g["b1"], B)
            sc2, sh2 = _fold_bn(g["bn2"], g["b2"], B)
            flat += [g["att1"], _block_diag(g["w1"], B), sc1, sh1,
                     g["att2"], _block_diag(g["w2"], B), sc2, sh2]
        for i in range(n_sep - 1):
            c = gm["convs"][i]
            H = c["wc"].shape[1]
            sc, sh = _fold_bn(c["bn"], c["bc"], B)
            flat += [_block_diag(c["wc"][:H], B), _block_diag(c["wc"][H:], B), sc, sh]
    for i in range(n_sep):
        p = params["post"][i]
        flat += [p["att"], _block_diag(p["w"], B), jnp.tile(p["b"], B)[None, :]]
    return flat


def gcs_n_nonres_forward(x, params):
    """x: (n_separate, B, N, Fin) -> (B, N, n_separate*Fin)."""
    n_sep, B, N, Fin = x.shape
    assert n_sep == len(params["pre"])
    num_stage = len(params["gcms"])

    flat = _flatten_params(params, B)
    # lane-dense activation layout: (n_sep, N, B*Fin)  (lane index = b*Fin + f)
    x_in = jnp.transpose(x, (0, 2, 1, 3)).reshape(n_sep, N, B * Fin)

    out = pl.pallas_call(
        _make_kernel(n_sep, num_stage),
        out_shape=jax.ShapeDtypeStruct((n_sep, N, B * Fin), jnp.float32),
        # no grid: whole (tiny) problem in one step, full arrays resident in VMEM
    )(x_in, *flat)

    # (n_sep, N, B, Fin) -> (B, N, n_sep*Fin)  (matches torch.cat(..., dim=-1))
    return out.reshape(n_sep, N, B, Fin).transpose(2, 1, 0, 3).reshape(B, N, n_sep * Fin)


# ----------------------------------------------------------------------------
# Deterministic parameter init (mirrors PyTorch shapes / init style)
# ----------------------------------------------------------------------------
def init_graph_conv(key, in_f, out_f, N):
    stdv = 1.0 / math.sqrt(out_f)
    k0, k1, k2 = jax.random.split(key, 3)
    u = lambda kk, s: jax.random.uniform(kk, s, jnp.float32, -stdv, stdv)
    return {"w": u(k0, (in_f, out_f)), "att": u(k1, (N, N)), "b": u(k2, (out_f,))}


def init_bn(key, N, F):
    # Non-trivial eval-mode affine params / running stats so the BN fold is exercised.
    k0, k1, k2, k3 = jax.random.split(key, 4)
    return {"g": 1.0 + 0.1 * jax.random.normal(k0, (N, F), jnp.float32),
            "be": 0.1 * jax.random.normal(k1, (N, F), jnp.float32),
            "m": 0.1 * jax.random.normal(k2, (N, F), jnp.float32),
            "v": 1.0 + 0.5 * jax.random.uniform(k3, (N, F), jnp.float32)}


def init_gc_block(key, H, N):
    k = jax.random.split(key, 4)
    g1 = init_graph_conv(k[0], H, H, N)
    g2 = init_graph_conv(k[1], H, H, N)
    return {"w1": g1["w"], "att1": g1["att"], "b1": g1["b"], "bn1": init_bn(k[2], N, H),
            "w2": g2["w"], "att2": g2["att"], "b2": g2["b"], "bn2": init_bn(k[3], N, H)}


def init_conv_stage(key, H, N):
    bound = 1.0 / math.sqrt(2 * H)   # Conv1d(2H, H, kernel_size=1) fan-in bound
    k0, k1, k2 = jax.random.split(key, 3)
    u = lambda kk, s: jax.random.uniform(kk, s, jnp.float32, -bound, bound)
    return {"wc": u(k0, (2 * H, H)), "bc": u(k1, (H,)), "bn": init_bn(k2, N, H)}


def init_gc_module(key, H, N, n_sep):
    keys = jax.random.split(key, 2 * n_sep)
    return {"gcbs": [init_gc_block(keys[i], H, N) for i in range(n_sep)],
            "convs": [init_conv_stage(keys[n_sep + i], H, N) for i in range(n_sep - 1)]}


def init_gcs_n_nonres(key, Fin, H, N, n_sep, num_stage):
    keys = jax.random.split(key, 3 * n_sep + num_stage)
    pre, post = [], []
    for i in range(n_sep):
        g = init_graph_conv(keys[i], Fin, H, N)
        pre.append({**g, "bn": init_bn(keys[n_sep + i], N, H)})
        post.append(init_graph_conv(keys[2 * n_sep + i], H, Fin, N))
    gcms = [init_gc_module(keys[3 * n_sep + s], H, N, n_sep) for s in range(num_stage)]
    return {"pre": pre, "gcms": gcms, "post": post}


# ----------------------------------------------------------------------------
# Pure-JAX reference (unfolded math, for correctness check)
# ----------------------------------------------------------------------------
def _gc_ref(x, w, att, b):
    return jnp.einsum("nm,bmf->bnf", att, x @ w) + b


def _bn_ref(y, bn):
    return (y - bn["m"]) / jnp.sqrt(bn["v"] + BN_EPS) * bn["g"] + bn["be"]


def _gc_block_ref(x, p):
    y = jnp.tanh(_bn_ref(_gc_ref(x, p["w1"], p["att1"], p["b1"]), p["bn1"]))
    y = jnp.tanh(_bn_ref(_gc_ref(y, p["w2"], p["att2"], p["b2"]), p["bn2"]))
    return y + x


def gcs_n_nonres_ref(x, params):
    n_sep = len(params["pre"])
    F = []
    for i in range(n_sep):
        p = params["pre"][i]
        F.append(jnp.tanh(_bn_ref(_gc_ref(x[i], p["w"], p["att"], p["b"]), p["bn"])))
    for gm in params["gcms"]:
        y = [_gc_block_ref(F[0], gm["gcbs"][0])]
        for i in range(1, n_sep):
            c = gm["convs"][i - 1]
            cat = jnp.concatenate([F[i], y[i - 1]], axis=-1)
            conv = jnp.tanh(_bn_ref(cat @ c["wc"] + c["bc"], c["bn"]))
            y.append(_gc_block_ref(conv, gm["gcbs"][i]))
        F = y
    outs = [_gc_ref(F[i], params["post"][i]["w"], params["post"][i]["att"], params["post"][i]["b"])
            for i in range(n_sep)]
    return jnp.concatenate(outs, axis=-1)


# ----------------------------------------------------------------------------
if __name__ == "__main__":
    input_feature = 16
    hidden_feature = 32
    node_n = 48
    n_separate = 2
    num_stage = 1
    B = 2

    key = jax.random.PRNGKey(0)
    k_param, k_x = jax.random.split(key)
    params = init_gcs_n_nonres(k_param, input_feature, hidden_feature, node_n,
                               n_separate, num_stage)
    x = jax.random.normal(k_x, (n_separate, B, node_n, input_feature), jnp.float32)

    fwd = jax.jit(gcs_n_nonres_forward)
    out = jax.block_until_ready(fwd(x, params))

    ref = gcs_n_nonres_ref(x, params)
    np.testing.assert_allclose(np.asarray(out), np.asarray(ref), rtol=1e-4, atol=1e-4)

    print("KERNEL_OK")
</pallas_src>

<mosaic_0001>
module attributes {stable_mosaic.version = 11 : i64} {
  func.func @kernel(%arg0: memref<2x48x32xf32, #tpu.memory_space<vmem>>, %arg1: memref<48x48xf32, #tpu.memory_space<vmem>>, %arg2: memref<32x64xf32, #tpu.memory_space<vmem>>, %arg3: memref<48x64xf32, #tpu.memory_space<vmem>>, %arg4: memref<48x64xf32, #tpu.memory_space<vmem>>, %arg5: memref<48x48xf32, #tpu.memory_space<vmem>>, %arg6: memref<32x64xf32, #tpu.memory_space<vmem>>, %arg7: memref<48x64xf32, #tpu.memory_space<vmem>>, %arg8: memref<48x64xf32, #tpu.memory_space<vmem>>, %arg9: memref<48x48xf32, #tpu.memory_space<vmem>>, %arg10: memref<64x64xf32, #tpu.memory_space<vmem>>, %arg11: memref<48x64xf32, #tpu.memory_space<vmem>>, %arg12: memref<48x64xf32, #tpu.memory_space<vmem>>, %arg13: memref<48x48xf32, #tpu.memory_space<vmem>>, %arg14: memref<64x64xf32, #tpu.memory_space<vmem>>, %arg15: memref<48x64xf32, #tpu.memory_space<vmem>>, %arg16: memref<48x64xf32, #tpu.memory_space<vmem>>, %arg17: memref<48x48xf32, #tpu.memory_space<vmem>>, %arg18: memref<64x64xf32, #tpu.memory_space<vmem>>, %arg19: memref<48x64xf32, #tpu.memory_space<vmem>>, %arg20: memref<48x64xf32, #tpu.memory_space<vmem>>, %arg21: memref<48x48xf32, #tpu.memory_space<vmem>>, %arg22: memref<64x64xf32, #tpu.memory_space<vmem>>, %arg23: memref<48x64xf32, #tpu.memory_space<vmem>>, %arg24: memref<48x64xf32, #tpu.memory_space<vmem>>, %arg25: memref<64x64xf32, #tpu.memory_space<vmem>>, %arg26: memref<64x64xf32, #tpu.memory_space<vmem>>, %arg27: memref<48x64xf32, #tpu.memory_space<vmem>>, %arg28: memref<48x64xf32, #tpu.memory_space<vmem>>, %arg29: memref<48x48xf32, #tpu.memory_space<vmem>>, %arg30: memref<64x32xf32, #tpu.memory_space<vmem>>, %arg31: memref<1x32xf32, #tpu.memory_space<vmem>>, %arg32: memref<48x48xf32, #tpu.memory_space<vmem>>, %arg33: memref<64x32xf32, #tpu.memory_space<vmem>>, %arg34: memref<1x32xf32, #tpu.memory_space<vmem>>, %arg35: memref<2x48x32xf32, #tpu.memory_space<vmem>>) attributes {dimension_semantics = [], scalar_prefetch = 0 : i64, scratch_operands = 0 : i64, tpu.core_type = #tpu.core_type<tc>} {
    %c0 = arith.constant 0 : index
    %c0_0 = arith.constant 0 : index
    %c0_1 = arith.constant 0 : index
    %0 = vector.load %arg0[%c0, %c0_0, %c0_1] : memref<2x48x32xf32, #tpu.memory_space<vmem>>, vector<1x48x32xf32>
    %1 = vector.shape_cast %0 : vector<1x48x32xf32> to vector<48x32xf32>
    %c0_2 = arith.constant 0 : index
    %c0_3 = arith.constant 0 : index
    %2 = vector.load %arg2[%c0_2, %c0_3] : memref<32x64xf32, #tpu.memory_space<vmem>>, vector<32x64xf32>
    %cst = arith.constant dense<0.000000e+00> : vector<48x64xf32>
    %3 = tpu.matmul %1, %2, %cst {dimension_numbers = #tpu.dot_dimension_numbers<[1], [0], [0], [1], [0, 0, 1, 1], [], []>} : vector<48x32xf32>, vector<32x64xf32>, vector<48x64xf32> -> vector<48x64xf32>
    %c0_4 = arith.constant 0 : index
    %c0_5 = arith.constant 0 : index
    %4 = vector.load %arg1[%c0_4, %c0_5] : memref<48x48xf32, #tpu.memory_space<vmem>>, vector<48x48xf32>
    %cst_6 = arith.constant dense<0.000000e+00> : vector<48x64xf32>
    %5 = tpu.matmul %4, %3, %cst_6 {dimension_numbers = #tpu.dot_dimension_numbers<[1], [0], [0], [1], [0, 0, 1, 1], [], []>} : vector<48x48xf32>, vector<48x64xf32>, vector<48x64xf32> -> vector<48x64xf32>
    %c0_7 = arith.constant 0 : index
    %c0_8 = arith.constant 0 : index
    %6 = vector.load %arg3[%c0_7, %c0_8] : memref<48x64xf32, #tpu.memory_space<vmem>>, vector<48x64xf32>
    %7 = arith.mulf %5, %6 : vector<48x64xf32>
    %c0_9 = arith.constant 0 : index
    %c0_10 = arith.constant 0 : index
    %8 = vector.load %arg4[%c0_9, %c0_10] : memref<48x64xf32, #tpu.memory_space<vmem>>, vector<48x64xf32>
    %9 = arith.addf %7, %8 : vector<48x64xf32>
    %10 = math.tanh %9 : vector<48x64xf32>
    %c1 = arith.constant 1 : index
    %c0_11 = arith.constant 0 : index
    %c0_12 = arith.constant 0 : index
    %11 = vector.load %arg0[%c1, %c0_11, %c0_12] : memref<2x48x32xf32, #tpu.memory_space<vmem>>, vector<1x48x32xf32>
    %12 = vector.shape_cast %11 : vector<1x48x32xf32> to vector<48x32xf32>
    %c0_13 = arith.constant 0 : index
    %c0_14 = arith.constant 0 : index
    %13 = vector.load %arg6[%c0_13, %c0_14] : memref<32x64xf32, #tpu.memory_space<vmem>>, vector<32x64xf32>
    %cst_15 = arith.constant dense<0.000000e+00> : vector<48x64xf32>
    %14 = tpu.matmul %12, %13, %cst_15 {dimension_numbers = #tpu.dot_dimension_numbers<[1], [0], [0], [1], [0, 0, 1, 1], [], []>} : vector<48x32xf32>, vector<32x64xf32>, vector<48x64xf32> -> vector<48x64xf32>
    %c0_16 = arith.constant 0 : index
    %c0_17 = arith.constant 0 : index
    %15 = vector.load %arg5[%c0_16, %c0_17] : memref<48x48xf32, #tpu.memory_space<vmem>>, vector<48x48xf32>
    %cst_18 = arith.constant dense<0.000000e+00> : vector<48x64xf32>
    %16 = tpu.matmul %15, %14, %cst_18 {dimension_numbers = #tpu.dot_dimension_numbers<[1], [0], [0], [1], [0, 0, 1, 1], [], []>} : vector<48x48xf32>, vector<48x64xf32>, vector<48x64xf32> -> vector<48x64xf32>
    %c0_19 = arith.constant 0 : index
    %c0_20 = arith.constant 0 : index
    %17 = vector.load %arg7[%c0_19, %c0_20] : memref<48x64xf32, #tpu.memory_space<vmem>>, vector<48x64xf32>
    %18 = arith.mulf %16, %17 : vector<48x64xf32>
    %c0_21 = arith.constant 0 : index
    %c0_22 = arith.constant 0 : index
    %19 = vector.load %arg8[%c0_21, %c0_22] : memref<48x64xf32, #tpu.memory_space<vmem>>, vector<48x64xf32>
    %20 = arith.addf %18, %19 : vector<48x64xf32>
    %21 = math.tanh %20 : vector<48x64xf32>
    %c0_23 = arith.constant 0 : index
    %c0_24 = arith.constant 0 : index
    %22 = vector.load %arg10[%c0_23, %c0_24] : memref<64x64xf32, #tpu.memory_space<vmem>>, vector<64x64xf32>
    %cst_25 = arith.constant dense<0.000000e+00> : vector<48x64xf32>
    %23 = tpu.matmul %10, %22, %cst_25 {dimension_numbers = #tpu.dot_dimension_numbers<[1], [0], [0], [1], [0, 0, 1, 1], [], []>} : vector<48x64xf32>, vector<64x64xf32>, vector<48x64xf32> -> vector<48x64xf32>
    %c0_26 = arith.constant 0 : index
    %c0_27 = arith.constant 0 : index
    %24 = vector.load %arg9[%c0_26, %c0_27] : memref<48x48xf32, #tpu.memory_space<vmem>>, vector<48x48xf32>
    %cst_28 = arith.constant dense<0.000000e+00> : vector<48x64xf32>
    %25 = tpu.matmul %24, %23, %cst_28 {dimension_numbers = #tpu.dot_dimension_numbers<[1], [0], [0], [1], [0, 0, 1, 1], [], []>} : vector<48x48xf32>, vector<48x64xf32>, vector<48x64xf32> -> vector<48x64xf32>
    %c0_29 = arith.constant 0 : index
    %c0_30 = arith.constant 0 : index
    %26 = vector.load %arg11[%c0_29, %c0_30] : memref<48x64xf32, #tpu.memory_space<vmem>>, vector<48x64xf32>
    %27 = arith.mulf %25, %26 : vector<48x64xf32>
    %c0_31 = arith.constant 0 : index
    %c0_32 = arith.constant 0 : index
    %28 = vector.load %arg12[%c0_31, %c0_32] : memref<48x64xf32, #tpu.memory_space<vmem>>, vector<48x64xf32>
    %29 = arith.addf %27, %28 : vector<48x64xf32>
    %30 = math.tanh %29 : vector<48x64xf32>
    %c0_33 = arith.constant 0 : index
    %c0_34 = arith.constant 0 : index
    %31 = vector.load %arg14[%c0_33, %c0_34] : memref<64x64xf32, #tpu.memory_space<vmem>>, vector<64x64xf32>
    %cst_35 = arith.constant dense<0.000000e+00> : vector<48x64xf32>
    %32 = tpu.matmul %30, %31, %cst_35 {dimension_numbers = #tpu.dot_dimension_numbers<[1], [0], [0], [1], [0, 0, 1, 1], [], []>} : vector<48x64xf32>, vector<64x64xf32>, vector<48x64xf32> -> vector<48x64xf32>
    %c0_36 = arith.constant 0 : index
    %c0_37 = arith.constant 0 : index
    %33 = vector.load %arg13[%c0_36, %c0_37] : memref<48x48xf32, #tpu.memory_space<vmem>>, vector<48x48xf32>
    %cst_38 = arith.constant dense<0.000000e+00> : vector<48x64xf32>
    %34 = tpu.matmul %33, %32, %cst_38 {dimension_numbers = #tpu.dot_dimension_numbers<[1], [0], [0], [1], [0, 0, 1, 1], [], []>} : vector<48x48xf32>, vector<48x64xf32>, vector<48x64xf32> -> vector<48x64xf32>
    %c0_39 = arith.constant 0 : index
    %c0_40 = arith.constant 0 : index
    %35 = vector.load %arg15[%c0_39, %c0_40] : memref<48x64xf32, #tpu.memory_space<vmem>>, vector<48x64xf32>
    %36 = arith.mulf %34, %35 : vector<48x64xf32>
    %c0_41 = arith.constant 0 : index
    %c0_42 = arith.constant 0 : index
    %37 = vector.load %arg16[%c0_41, %c0_42] : memref<48x64xf32, #tpu.memory_space<vmem>>, vector<48x64xf32>
    %38 = arith.addf %36, %37 : vector<48x64xf32>
    %39 = math.tanh %38 : vector<48x64xf32>
    %40 = arith.addf %39, %10 : vector<48x64xf32>
    %c0_43 = arith.constant 0 : index
    %c0_44 = arith.constant 0 : index
    %41 = vector.load %arg25[%c0_43, %c0_44] : memref<64x64xf32, #tpu.memory_space<vmem>>, vector<64x64xf32>
    %cst_45 = arith.constant dense<0.000000e+00> : vector<48x64xf32>
    %42 = tpu.matmul %21, %41, %cst_45 {dimension_numbers = #tpu.dot_dimension_numbers<[1], [0], [0], [1], [0, 0, 1, 1], [], []>} : vector<48x64xf32>, vector<64x64xf32>, vector<48x64xf32> -> vector<48x64xf32>
    %c0_46 = arith.constant 0 : index
    %c0_47 = arith.constant 0 : index
    %43 = vector.load %arg26[%c0_46, %c0_47] : memref<64x64xf32, #tpu.memory_space<vmem>>, vector<64x64xf32>
    %cst_48 = arith.constant dense<0.000000e+00> : vector<48x64xf32>
    %44 = tpu.matmul %40, %43, %cst_48 {dimension_numbers = #tpu.dot_dimension_numbers<[1], [0], [0], [1], [0, 0, 1, 1], [], []>} : vector<48x64xf32>, vector<64x64xf32>, vector<48x64xf32> -> vector<48x64xf32>
    %45 = arith.addf %42, %44 : vector<48x64xf32>
    %c0_49 = arith.constant 0 : index
    %c0_50 = arith.constant 0 : index
    %46 = vector.load %arg27[%c0_49, %c0_50] : memref<48x64xf32, #tpu.memory_space<vmem>>, vector<48x64xf32>
    %47 = arith.mulf %45, %46 : vector<48x64xf32>
    %c0_51 = arith.constant 0 : index
    %c0_52 = arith.constant 0 : index
    %48 = vector.load %arg28[%c0_51, %c0_52] : memref<48x64xf32, #tpu.memory_space<vmem>>, vector<48x64xf32>
    %49 = arith.addf %47, %48 : vector<48x64xf32>
    %50 = math.tanh %49 : vector<48x64xf32>
    %c0_53 = arith.constant 0 : index
    %c0_54 = arith.constant 0 : index
    %51 = vector.load %arg18[%c0_53, %c0_54] : memref<64x64xf32, #tpu.memory_space<vmem>>, vector<64x64xf32>
    %cst_55 = arith.constant dense<0.000000e+00> : vector<48x64xf32>
    %52 = tpu.matmul %50, %51, %cst_55 {dimension_numbers = #tpu.dot_dimension_numbers<[1], [0], [0], [1], [0, 0, 1, 1], [], []>} : vector<48x64xf32>, vector<64x64xf32>, vector<48x64xf32> -> vector<48x64xf32>
    %c0_56 = arith.constant 0 : index
    %c0_57 = arith.constant 0 : index
    %53 = vector.load %arg17[%c0_56, %c0_57] : memref<48x48xf32, #tpu.memory_space<vmem>>, vector<48x48xf32>
    %cst_58 = arith.constant dense<0.000000e+00> : vector<48x64xf32>
    %54 = tpu.matmul %53, %52, %cst_58 {dimension_numbers = #tpu.dot_dimension_numbers<[1], [0], [0], [1], [0, 0, 1, 1], [], []>} : vector<48x48xf32>, vector<48x64xf32>, vector<48x64xf32> -> vector<48x64xf32>
    %c0_59 = arith.constant 0 : index
    %c0_60 = arith.constant 0 : index
    %55 = vector.load %arg19[%c0_59, %c0_60] : memref<48x64xf32, #tpu.memory_space<vmem>>, vector<48x64xf32>
    %56 = arith.mulf %54, %55 : vector<48x64xf32>
    %c0_61 = arith.constant 0 : index
    %c0_62 = arith.constant 0 : index
    %57 = vector.load %arg20[%c0_61, %c0_62] : memref<48x64xf32, #tpu.memory_space<vmem>>, vector<48x64xf32>
    %58 = arith.addf %56, %57 : vector<48x64xf32>
    %59 = math.tanh %58 : vector<48x64xf32>
    %c0_63 = arith.constant 0 : index
    %c0_64 = arith.constant 0 : index
    %60 = vector.load %arg22[%c0_63, %c0_64] : memref<64x64xf32, #tpu.memory_space<vmem>>, vector<64x64xf32>
    %cst_65 = arith.constant dense<0.000000e+00> : vector<48x64xf32>
    %61 = tpu.matmul %59, %60, %cst_65 {dimension_numbers = #tpu.dot_dimension_numbers<[1], [0], [0], [1], [0, 0, 1, 1], [], []>} : vector<48x64xf32>, vector<64x64xf32>, vector<48x64xf32> -> vector<48x64xf32>
    %c0_66 = arith.constant 0 : index
    %c0_67 = arith.constant 0 : index
    %62 = vector.load %arg21[%c0_66, %c0_67] : memref<48x48xf32, #tpu.memory_space<vmem>>, vector<48x48xf32>
    %cst_68 = arith.constant dense<0.000000e+00> : vector<48x64xf32>
    %63 = tpu.matmul %62, %61, %cst_68 {dimension_numbers = #tpu.dot_dimension_numbers<[1], [0], [0], [1], [0, 0, 1, 1], [], []>} : vector<48x48xf32>, vector<48x64xf32>, vector<48x64xf32> -> vector<48x64xf32>
    %c0_69 = arith.constant 0 : index
    %c0_70 = arith.constant 0 : index
    %64 = vector.load %arg23[%c0_69, %c0_70] : memref<48x64xf32, #tpu.memory_space<vmem>>, vector<48x64xf32>
    %65 = arith.mulf %63, %64 : vector<48x64xf32>
    %c0_71 = arith.constant 0 : index
    %c0_72 = arith.constant 0 : index
    %66 = vector.load %arg24[%c0_71, %c0_72] : memref<48x64xf32, #tpu.memory_space<vmem>>, vector<48x64xf32>
    %67 = arith.addf %65, %66 : vector<48x64xf32>
    %68 = math.tanh %67 : vector<48x64xf32>
    %69 = arith.addf %68, %50 : vector<48x64xf32>
    %c0_73 = arith.constant 0 : index
    %c0_74 = arith.constant 0 : index
    %70 = vector.load %arg30[%c0_73, %c0_74] : memref<64x32xf32, #tpu.memory_space<vmem>>, vector<64x32xf32>
    %cst_75 = arith.constant dense<0.000000e+00> : vector<48x32xf32>
    %71 = tpu.matmul %40, %70, %cst_75 {dimension_numbers = #tpu.dot_dimension_numbers<[1], [0], [0], [1], [0, 0, 1, 1], [], []>} : vector<48x64xf32>, vector<64x32xf32>, vector<48x32xf32> -> vector<48x32xf32>
    %c0_76 = arith.constant 0 : index
    %c0_77 = arith.constant 0 : index
    %72 = vector.load %arg29[%c0_76, %c0_77] : memref<48x48xf32, #tpu.memory_space<vmem>>, vector<48x48xf32>
    %cst_78 = arith.constant dense<0.000000e+00> : vector<48x32xf32>
    %73 = tpu.matmul %72, %71, %cst_78 {dimension_numbers = #tpu.dot_dimension_numbers<[1], [0], [0], [1], [0, 0, 1, 1], [], []>} : vector<48x48xf32>, vector<48x32xf32>, vector<48x32xf32> -> vector<48x32xf32>
    %c0_79 = arith.constant 0 : index
    %c0_80 = arith.constant 0 : index
    %74 = vector.load %arg31[%c0_79, %c0_80] : memref<1x32xf32, #tpu.memory_space<vmem>>, vector<1x32xf32>
    %75 = vector.broadcast %74 : vector<1x32xf32> to vector<48x32xf32>
    %76 = arith.addf %73, %75 : vector<48x32xf32>
    %c0_81 = arith.constant 0 : index
    %c0_82 = arith.constant 0 : index
    %c0_83 = arith.constant 0 : index
    %77 = vector.load %arg35[%c0_81, %c0_82, %c0_83] : memref<2x48x32xf32, #tpu.memory_space<vmem>>, vector<1x48x32xf32>
    %78 = vector.shape_cast %77 : vector<1x48x32xf32> to vector<48x32xf32>
    %79 = vector.shape_cast %76 : vector<48x32xf32> to vector<1x48x32xf32>
    tpu.vector_store %arg35[%c0_81, %c0_82, %c0_83], %79 {strides = array<i32>} : memref<2x48x32xf32, #tpu.memory_space<vmem>>, vector<1x48x32xf32>,
    %c0_84 = arith.constant 0 : index
    %c0_85 = arith.constant 0 : index
    %80 = vector.load %arg33[%c0_84, %c0_85] : memref<64x32xf32, #tpu.memory_space<vmem>>, vector<64x32xf32>
    %cst_86 = arith.constant dense<0.000000e+00> : vector<48x32xf32>
    %81 = tpu.matmul %69, %80, %cst_86 {dimension_numbers = #tpu.dot_dimension_numbers<[1], [0], [0], [1], [0, 0, 1, 1], [], []>} : vector<48x64xf32>, vector<64x32xf32>, vector<48x32xf32> -> vector<48x32xf32>
    %c0_87 = arith.constant 0 : index
    %c0_88 = arith.constant 0 : index
    %82 = vector.load %arg32[%c0_87, %c0_88] : memref<48x48xf32, #tpu.memory_space<vmem>>, vector<48x48xf32>
    %cst_89 = arith.constant dense<0.000000e+00> : vector<48x32xf32>
    %83 = tpu.matmul %82, %81, %cst_89 {dimension_numbers = #tpu.dot_dimension_numbers<[1], [0], [0], [1], [0, 0, 1, 1], [], []>} : vector<48x48xf32>, vector<48x32xf32>, vector<48x32xf32> -> vector<48x32xf32>
    %c0_90 = arith.constant 0 : index
    %c0_91 = arith.constant 0 : index
    %84 = vector.load %arg34[%c0_90, %c0_91] : memref<1x32xf32, #tpu.memory_space<vmem>>, vector<1x32xf32>
    %85 = vector.broadcast %84 : vector<1x32xf32> to vector<48x32xf32>
    %86 = arith.addf %83, %85 : vector<48x32xf32>
    %c1_92 = arith.constant 1 : index
    %c0_93 = arith.constant 0 : index
    %c0_94 = arith.constant 0 : index
    %87 = vector.load %arg35[%c1_92, %c0_93, %c0_94] : memref<2x48x32xf32, #tpu.memory_space<vmem>>, vector<1x48x32xf32>
    %88 = vector.shape_cast %87 : vector<1x48x32xf32> to vector<48x32xf32>
    %89 = vector.shape_cast %86 : vector<48x32xf32> to vector<1x48x32xf32>
    tpu.vector_store %arg35[%c1_92, %c0_93, %c0_94], %89 {strides = array<i32>} : memref<2x48x32xf32, #tpu.memory_space<vmem>>, vector<1x48x32xf32>,
    return
  }
}

</mosaic_0001>

<llo_original>
// kernel: tile.153
$region0: #{tile.153}
  #allocation0 [shape = 's32[1]{0}', space=sflag, size = 0x4, scoped, tag = 'scoped memory for tile.153']
  %s0 = inlined_call_operand.vmem [shape: f32[16], index: 0, kind: input, shape index: {}]
  %s1 = inlined_call_operand.vmem [shape: f32[2,16], index: 1, kind: output, shape index: {}]
  // Predicated region
  $region2: #{tile.153} parent=0 // pred_check
    _
  $region3: #{tile.153} parent=0 // pred_check_branch
    %3 = sbr.rel (0) target = $region5
  $region4: #{tile.153} parent=0 // pred_region
    _
  $region5: #{tile.153} parent=0 // pred_fallthru
    _
  %v4 = vld [vmem:[%s0] ss:$0 sm:$0xff]
  %5 = vst [vmem:[%s1] sm:$0x3] %v4

// kernel: tile.154
$region0: #{tile.154}
  %s0 = inlined_call_operand.vmem [shape: f32[2,16], index: 0, kind: input, shape index: {}]
  %s1 = inlined_call_operand.vmem [shape: f32[1,32], index: 1, kind: output, shape index: {}]
  $region1: #{tile.154} parent=0
    #allocation0 [shape = 'u8[4096]{0}', space=vmem, size = 0x1000, scoped, tag = 'scoped mem for output reshape']
    #allocation1 [shape = 'u8[4096]{0}', space=vmem, size = 0x1000, scoped, tag = 'scoped mem for input reshape']
    %s3 = sshll.u32 1, 2
    %s4 = ssub.s32 %s3, 1
    %v5 = vld [vmem:[%s0] sm:%s4]
    %6 = vst [vmem:[#allocation1] sm:%s4] %v5
    %v7 = vld [vmem:[#allocation1] sm:$0x1]
    %vm8 = vcmask 130048
    %9 = vst.msk [vmem:[#allocation0] sm:$0x1] %vm8, %v7
    %s10 = scalar_lea.vmem [#allocation1], 1
    %v11 = vld [vmem:[%s10] sm:$0x1]
    %12 = vrot.lane.b32.xlu0 %v11, 16
    %v13 = vpop.permute.xlu0 %12
    %vm14 = vcmask 261248
    %15 = vst.msk [vmem:[#allocation0] sm:$0x1] %vm14, %v13
    %s17 = sshll.u32 1, 1
    %s18 = ssub.s32 %s17, 1
    %v20 = vld [vmem:[#allocation0] sm:%s18]
    %s21 = sshll.u32 1, 1
    %s22 = ssub.s32 %s21, 1
    %23 = vst [vmem:[%s1] sm:%s22] %v20

// kernel: gcs_n_nonres_forward.1
$region0: #{gcs_n_nonres_forward.1}
  #allocation0 [shape = 'u32[]', space=smem, size = 0x4, offset = 0x4, fixed_abs, tag = 'smem constant byte address 0x4 - core index']
  #allocation1 [shape = 'u32[144,128]{1,0:T(1,128)}', space=vmem, size = 0x12000, scoped, tag = 'internal scratch']
  %s0 = inlined_call_operand.smem [shape: u32[36], index: -1, kind: input, shape index: {}]
  %s1 = sld [smem:[%s0]]
  %s2 = scalar_lea.smem %s0, 1
  %s3 = sld [smem:[%s2]]
  %s4 = scalar_lea.smem %s0, 2
  %s5 = sld [smem:[%s4]]
  %s6 = scalar_lea.smem %s0, 3
  %s7 = sld [smem:[%s6]]
  %s8 = scalar_lea.smem %s0, 4
  %s9 = sld [smem:[%s8]]
  %s10 = scalar_lea.smem %s0, 5
  %s11 = sld [smem:[%s10]]
  %s12 = scalar_lea.smem %s0, 6
  %s13 = sld [smem:[%s12]]
  %s14 = scalar_lea.smem %s0, 7
  %s15 = sld [smem:[%s14]]
  %s16 = scalar_lea.smem %s0, 8
  %s17 = sld [smem:[%s16]]
  %s18 = scalar_lea.smem %s0, 9
  %s19 = sld [smem:[%s18]]
  %s20 = scalar_lea.smem %s0, 10
  %s21 = sld [smem:[%s20]]
  %s22 = scalar_lea.smem %s0, 11
  %s23 = sld [smem:[%s22]]
  %s24 = scalar_lea.smem %s0, 12
  %s25 = sld [smem:[%s24]]
  %s26 = scalar_lea.smem %s0, 13
  %s27 = sld [smem:[%s26]]
  %s28 = scalar_lea.smem %s0, 14
  %s29 = sld [smem:[%s28]]
  %s30 = scalar_lea.smem %s0, 15
  %s31 = sld [smem:[%s30]]
  %s32 = scalar_lea.smem %s0, 16
  %s33 = sld [smem:[%s32]]
  %s34 = scalar_lea.smem %s0, 17
  %s35 = sld [smem:[%s34]]
  %s36 = scalar_lea.smem %s0, 18
  %s37 = sld [smem:[%s36]]
  %s38 = scalar_lea.smem %s0, 19
  %s39 = sld [smem:[%s38]]
  %s40 = scalar_lea.smem %s0, 20
  %s41 = sld [smem:[%s40]]
  %s42 = scalar_lea.smem %s0, 21
  %s43 = sld [smem:[%s42]]
  %s44 = scalar_lea.smem %s0, 22
  %s45 = sld [smem:[%s44]]
  %s46 = scalar_lea.smem %s0, 23
  %s47 = sld [smem:[%s46]]
  %s48 = scalar_lea.smem %s0, 24
  %s49 = sld [smem:[%s48]]
  %s50 = scalar_lea.smem %s0, 25
  %s51 = sld [smem:[%s50]]
  %s52 = scalar_lea.smem %s0, 26
  %s53 = sld [smem:[%s52]]
  %s54 = scalar_lea.smem %s0, 27
  %s55 = sld [smem:[%s54]]
  %s56 = scalar_lea.smem %s0, 28
  %s57 = sld [smem:[%s56]]
  %s58 = scalar_lea.smem %s0, 29
  %s59 = sld [smem:[%s58]]
  %s60 = scalar_lea.smem %s0, 30
  %s61 = sld [smem:[%s60]]
  %s62 = scalar_lea.smem %s0, 31
  %s63 = sld [smem:[%s62]]
  %s64 = scalar_lea.smem %s0, 32
  %s65 = sld [smem:[%s64]]
  %s66 = scalar_lea.smem %s0, 33
  %s67 = sld [smem:[%s66]]
  %s68 = scalar_lea.smem %s0, 34
  %s69 = sld [smem:[%s68]]
  %s70 = scalar_lea.smem %s0, 35
  %s71 = sld [smem:[%s70]]
  %s72 = sld [smem:[#allocation0]]
  $region150: #{gcs_n_nonres_forward.1} parent=0
    _
  %s74 = ssub.s32 1, %s72
  %s75 = scalar_select 0, %s74, %s72
  // Predicated region
  $region2: #{gcs_n_nonres_forward.1} parent=0 // pred_check
    _
  $region3: #{gcs_n_nonres_forward.1} parent=0 // pred_check_branch
    %77 = sbr.rel (0) target = $region5
  $region4: #{gcs_n_nonres_forward.1} parent=0 // pred_region
    _
  $region5: #{gcs_n_nonres_forward.1} parent=0 // pred_fallthru
    _
  // Predicated region
  $region6: #{gcs_n_nonres_forward.1} parent=0 // pred_check
    _
  $region7: #{gcs_n_nonres_forward.1} parent=0 // pred_check_branch
    %79 = sbr.rel (0) target = $region9
  $region8: #{gcs_n_nonres_forward.1} parent=0 // pred_region
    _
  $region9: #{gcs_n_nonres_forward.1} parent=0 // pred_fallthru
    _
  // Predicated region
  $region10: #{gcs_n_nonres_forward.1} parent=0 // pred_check
    _
  $region11: #{gcs_n_nonres_forward.1} parent=0 // pred_check_branch
    %81 = sbr.rel (0) target = $region13
  $region12: #{gcs_n_nonres_forward.1} parent=0 // pred_region
    _
  $region13: #{gcs_n_nonres_forward.1} parent=0 // pred_fallthru
    _
  // Predicated region
  $region14: #{gcs_n_nonres_forward.1} parent=0 // pred_check
    _
  $region15: #{gcs_n_nonres_forward.1} parent=0 // pred_check_branch
    %83 = sbr.rel (0) target = $region17
  $region16: #{gcs_n_nonres_forward.1} parent=0 // pred_region
    _
  $region17: #{gcs_n_nonres_forward.1} parent=0 // pred_fallthru
    _
  // Predicated region
  $region18: #{gcs_n_nonres_forward.1} parent=0 // pred_check
    _
  $region19: #{gcs_n_nonres_forward.1} parent=0 // pred_check_branch
    %85 = sbr.rel (0) target = $region21
  $region20: #{gcs_n_nonres_forward.1} parent=0 // pred_region
    _
  $region21: #{gcs_n_nonres_forward.1} parent=0 // pred_fallthru
    _
  // Predicated region
  $region22: #{gcs_n_nonres_forward.1} parent=0 // pred_check
    _
  $region23: #{gcs_n_nonres_forward.1} parent=0 // pred_check_branch
    %87 = sbr.rel (0) target = $region25
  $region24: #{gcs_n_nonres_forward.1} parent=0 // pred_region
    _
  $region25: #{gcs_n_nonres_forward.1} parent=0 // pred_fallthru
    _
  // Predicated region
  $region26: #{gcs_n_nonres_forward.1} parent=0 // pred_check
    _
  $region27: #{gcs_n_nonres_forward.1} parent=0 // pred_check_branch
    %89 = sbr.rel (0) target = $region29
  $region28: #{gcs_n_nonres_forward.1} parent=0 // pred_region
    _
  $region29: #{gcs_n_nonres_forward.1} parent=0 // pred_fallthru
    _
  // Predicated region
  $region30: #{gcs_n_nonres_forward.1} parent=0 // pred_check
    _
  $region31: #{gcs_n_nonres_forward.1} parent=0 // pred_check_branch
    %91 = sbr.rel (0) target = $region33
  $region32: #{gcs_n_nonres_forward.1} parent=0 // pred_region
    _
  $region33: #{gcs_n_nonres_forward.1} parent=0 // pred_fallthru
    _
  // Predicated region
  $region34: #{gcs_n_nonres_forward.1} parent=0 // pred_check
    _
  $region35: #{gcs_n_nonres_forward.1} parent=0 // pred_check_branch
    %93 = sbr.rel (0) target = $region37
  $region36: #{gcs_n_nonres_forward.1} parent=0 // pred_region
    _
  $region37: #{gcs_n_nonres_forward.1} parent=0 // pred_fallthru
    _
  // Predicated region
  $region38: #{gcs_n_nonres_forward.1} parent=0 // pred_check
    _
  $region39: #{gcs_n_nonres_forward.1} parent=0 // pred_check_branch
    %95 = sbr.rel (0) target = $region41
  $region40: #{gcs_n_nonres_forward.1} parent=0 // pred_region
    _
  $region41: #{gcs_n_nonres_forward.1} parent=0 // pred_fallthru
    _
  // Predicated region
  $region42: #{gcs_n_nonres_forward.1} parent=0 // pred_check
    _
  $region43: #{gcs_n_nonres_forward.1} parent=0 // pred_check_branch
    %97 = sbr.rel (0) target = $region45
  $region44: #{gcs_n_nonres_forward.1} parent=0 // pred_region
    _
  $region45: #{gcs_n_nonres_forward.1} parent=0 // pred_fallthru
    _
  // Predicated region
  $region46: #{gcs_n_nonres_forward.1} parent=0 // pred_check
    _
  $region47: #{gcs_n_nonres_forward.1} parent=0 // pred_check_branch
    %99 = sbr.rel (0) target = $region49
  $region48: #{gcs_n_nonres_forward.1} parent=0 // pred_region
    _
  $region49: #{gcs_n_nonres_forward.1} parent=0 // pred_fallthru
    _
  // Predicated region
  $region50: #{gcs_n_nonres_forward.1} parent=0 // pred_check
    _
  $region51: #{gcs_n_nonres_forward.1} parent=0 // pred_check_branch
    %101 = sbr.rel (0) target = $region53
  $region52: #{gcs_n_nonres_forward.1} parent=0 // pred_region
    _
  $region53: #{gcs_n_nonres_forward.1} parent=0 // pred_fallthru
    _
  // Predicated region
  $region54: #{gcs_n_nonres_forward.1} parent=0 // pred_check
    _
  $region55: #{gcs_n_nonres_forward.1} parent=0 // pred_check_branch
    %103 = sbr.rel (0) target = $region57
  $region56: #{gcs_n_nonres_forward.1} parent=0 // pred_region
    _
  $region57: #{gcs_n_nonres_forward.1} parent=0 // pred_fallthru
    _
  // Predicated region
  $region58: #{gcs_n_nonres_forward.1} parent=0 // pred_check
    _
  $region59: #{gcs_n_nonres_forward.1} parent=0 // pred_check_branch
    %105 = sbr.rel (0) target = $region61
  $region60: #{gcs_n_nonres_forward.1} parent=0 // pred_region
    _
  $region61: #{gcs_n_nonres_forward.1} parent=0 // pred_fallthru
    _
  // Predicated region
  $region62: #{gcs_n_nonres_forward.1} parent=0 // pred_check
    _
  $region63: #{gcs_n_nonres_forward.1} parent=0 // pred_check_branch
    %107 = sbr.rel (0) target = $region65
  $region64: #{gcs_n_nonres_forward.1} parent=0 // pred_region
    _
  $region65: #{gcs_n_nonres_forward.1} parent=0 // pred_fallthru
    _
  // Predicated region
  $region66: #{gcs_n_nonres_forward.1} parent=0 // pred_check
    _
  $region67: #{gcs_n_nonres_forward.1} parent=0 // pred_check_branch
    %109 = sbr.rel (0) target = $region69
  $region68: #{gcs_n_nonres_forward.1} parent=0 // pred_region
    _
  $region69: #{gcs_n_nonres_forward.1} parent=0 // pred_fallthru
    _
  // Predicated region
  $region70: #{gcs_n_nonres_forward.1} parent=0 // pred_check
    _
  $region71: #{gcs_n_nonres_forward.1} parent=0 // pred_check_branch
    %111 = sbr.rel (0) target = $region73
  $region72: #{gcs_n_nonres_forward.1} parent=0 // pred_region
    _
  $region73: #{gcs_n_nonres_forward.1} parent=0 // pred_fallthru
    _
  // Predicated region
  $region74: #{gcs_n_nonres_forward.1} parent=0 // pred_check
    _
  $region75: #{gcs_n_nonres_forward.1} parent=0 // pred_check_branch
    %113 = sbr.rel (0) target = $region77
  $region76: #{gcs_n_nonres_forward.1} parent=0 // pred_region
    _
  $region77: #{gcs_n_nonres_forward.1} parent=0 // pred_fallthru
    _
  // Predicated region
  $region78: #{gcs_n_nonres_forward.1} parent=0 // pred_check
    _
  $region79: #{gcs_n_nonres_forward.1} parent=0 // pred_check_branch
    %115 = sbr.rel (0) target = $region81
  $region80: #{gcs_n_nonres_forward.1} parent=0 // pred_region
    _
  $region81: #{gcs_n_nonres_forward.1} parent=0 // pred_fallthru
    _
  // Predicated region
  $region82: #{gcs_n_nonres_forward.1} parent=0 // pred_check
    _
  $region83: #{gcs_n_nonres_forward.1} parent=0 // pred_check_branch
    %117 = sbr.rel (0) target = $region85
  $region84: #{gcs_n_nonres_forward.1} parent=0 // pred_region
    _
  $region85: #{gcs_n_nonres_forward.1} parent=0 // pred_fallthru
    _
  // Predicated region
  $region86: #{gcs_n_nonres_forward.1} parent=0 // pred_check
    _
  $region87: #{gcs_n_nonres_forward.1} parent=0 // pred_check_branch
    %119 = sbr.rel (0) target = $region89
  $region88: #{gcs_n_nonres_forward.1} parent=0 // pred_region
    _
  $region89: #{gcs_n_nonres_forward.1} parent=0 // pred_fallthru
    _
  // Predicated region
  $region90: #{gcs_n_nonres_forward.1} parent=0 // pred_check
    _
  $region91: #{gcs_n_nonres_forward.1} parent=0 // pred_check_branch
    %121 = sbr.rel (0) target = $region93
  $region92: #{gcs_n_nonres_forward.1} parent=0 // pred_region
    _
  $region93: #{gcs_n_nonres_forward.1} parent=0 // pred_fallthru
    _
  // Predicated region
  $region94: #{gcs_n_nonres_forward.1} parent=0 // pred_check
    _
  $region95: #{gcs_n_nonres_forward.1} parent=0 // pred_check_branch
    %123 = sbr.rel (0) target = $region97
  $region96: #{gcs_n_nonres_forward.1} parent=0 // pred_region
    _
  $region97: #{gcs_n_nonres_forward.1} parent=0 // pred_fallthru
    _
  // Predicated region
  $region98: #{gcs_n_nonres_forward.1} parent=0 // pred_check
    _
  $region99: #{gcs_n_nonres_forward.1} parent=0 // pred_check_branch
    %125 = sbr.rel (0) target = $region101
  $region100: #{gcs_n_nonres_forward.1} parent=0 // pred_region
    _
  $region101: #{gcs_n_nonres_forward.1} parent=0 // pred_fallthru
    _
  // Predicated region
  $region102: #{gcs_n_nonres_forward.1} parent=0 // pred_check
    _
  $region103: #{gcs_n_nonres_forward.1} parent=0 // pred_check_branch
    %127 = sbr.rel (0) target = $region105
  $region104: #{gcs_n_nonres_forward.1} parent=0 // pred_region
    _
  $region105: #{gcs_n_nonres_forward.1} parent=0 // pred_fallthru
    _
  // Predicated region
  $region106: #{gcs_n_nonres_forward.1} parent=0 // pred_check
    _
  $region107: #{gcs_n_nonres_forward.1} parent=0 // pred_check_branch
    %129 = sbr.rel (0) target = $region109
  $region108: #{gcs_n_nonres_forward.1} parent=0 // pred_region
    _
  $region109: #{gcs_n_nonres_forward.1} parent=0 // pred_fallthru
    _
  // Predicated region
  $region110: #{gcs_n_nonres_forward.1} parent=0 // pred_check
    _
  $region111: #{gcs_n_nonres_forward.1} parent=0 // pred_check_branch
    %131 = sbr.rel (0) target = $region113
  $region112: #{gcs_n_nonres_forward.1} parent=0 // pred_region
    _
  $region113: #{gcs_n_nonres_forward.1} parent=0 // pred_fallthru
    _
  // Predicated region
  $region114: #{gcs_n_nonres_forward.1} parent=0 // pred_check
    _
  $region115: #{gcs_n_nonres_forward.1} parent=0 // pred_check_branch
    %133 = sbr.rel (0) target = $region117
  $region116: #{gcs_n_nonres_forward.1} parent=0 // pred_region
    _
  $region117: #{gcs_n_nonres_forward.1} parent=0 // pred_fallthru
    _
  // Predicated region
  $region118: #{gcs_n_nonres_forward.1} parent=0 // pred_check
    _
  $region119: #{gcs_n_nonres_forward.1} parent=0 // pred_check_branch
    %135 = sbr.rel (0) target = $region121
  $region120: #{gcs_n_nonres_forward.1} parent=0 // pred_region
    _
  $region121: #{gcs_n_nonres_forward.1} parent=0 // pred_fallthru
    _
  // Predicated region
  $region122: #{gcs_n_nonres_forward.1} parent=0 // pred_check
    _
  $region123: #{gcs_n_nonres_forward.1} parent=0 // pred_check_branch
    %137 = sbr.rel (0) target = $region125
  $region124: #{gcs_n_nonres_forward.1} parent=0 // pred_region
    _
  $region125: #{gcs_n_nonres_forward.1} parent=0 // pred_fallthru
    _
  // Predicated region
  $region126: #{gcs_n_nonres_forward.1} parent=0 // pred_check
    _
  $region127: #{gcs_n_nonres_forward.1} parent=0 // pred_check_branch
    %139 = sbr.rel (0) target = $region129
  $region128: #{gcs_n_nonres_forward.1} parent=0 // pred_region
    _
  $region129: #{gcs_n_nonres_forward.1} parent=0 // pred_fallthru
    _
  // Predicated region
  $region130: #{gcs_n_nonres_forward.1} parent=0 // pred_check
    _
  $region131: #{gcs_n_nonres_forward.1} parent=0 // pred_check_branch
    %141 = sbr.rel (0) target = $region133
  $region132: #{gcs_n_nonres_forward.1} parent=0 // pred_region
    _
  $region133: #{gcs_n_nonres_forward.1} parent=0 // pred_fallthru
    _
  // Predicated region
  $region134: #{gcs_n_nonres_forward.1} parent=0 // pred_check
    _
  $region135: #{gcs_n_nonres_forward.1} parent=0 // pred_check_branch
    %143 = sbr.rel (0) target = $region137
  $region136: #{gcs_n_nonres_forward.1} parent=0 // pred_region
    _
  $region137: #{gcs_n_nonres_forward.1} parent=0 // pred_fallthru
    _
  // Predicated region
  $region138: #{gcs_n_nonres_forward.1} parent=0 // pred_check
    _
  $region139: #{gcs_n_nonres_forward.1} parent=0 // pred_check_branch
    %145 = sbr.rel (0) target = $region141
  $region140: #{gcs_n_nonres_forward.1} parent=0 // pred_region
    _
  $region141: #{gcs_n_nonres_forward.1} parent=0 // pred_fallthru
    _
  %v146 = vld [vmem:[%s1] sm:$0xff]
  %v147 = vld [vmem:[%s1 + $0x8] sm:$0xff]
  %v148 = vld [vmem:[%s1 + $0x10] sm:$0xff]
  %v149 = vld [vmem:[%s1 + $0x18] sm:$0xff]
  %v150 = vld [vmem:[%s1 + $0x20] sm:$0xff]
  %v151 = vld [vmem:[%s1 + $0x28] sm:$0xff]
  %v152 = vld [vmem:[%s5] sm:$0xff]
  %v153 = vld [vmem:[%s5 + $0x8] sm:$0xff]
  %v154 = vld [vmem:[%s5 + $0x10] sm:$0xff]
  %v155 = vld [vmem:[%s5 + $0x18] sm:$0xff]
  %vm156 = vcmask 261120
  %v158 = vsel %vm156, %v146, 0
  %v161 = vsel %vm156, %v147, 0
  %v164 = vsel %vm156, %v148, 0
  %v167 = vsel %vm156, %v149, 0
  %v170 = vsel %vm156, %v150, 0
  %v173 = vsel %vm156, %v151, 0
  %175 = vmatprep.subr.mxu0 0.0
  %176 = vmatpush1.msra.mxu0 0.0
  %177 = vmatprep.subr.mxu0 0.0
  %178 = vmatpush1.msra.mxu0 0.0
  %179 = vmatprep.subr.mxu0 0.0
  %180 = vmatpush1.msra.mxu0 0.0
  %181 = vmatprep.subr.mxu0 0.0
  %182 = vmatpush1.msra.mxu0 0.0
  %183 = vmatprep.subr.mxu0 0.0
  %184 = vmatpush1.msra.mxu0 0.0
  %185 = vmatprep.subr.mxu0 0.0
  %186 = vmatpush1.msra.mxu0 0.0
  %187 = vmatprep.subr.mxu0 0.0
  %188 = vmatpush1.msra.mxu0 0.0
  %189 = vmatprep.subr.mxu0 0.0
  %190 = vmatpush1.msra.mxu0 0.0
  %191 = vmatprep.subr.mxu0 0.0
  %192 = vmatpush1.msra.mxu0 0.0
  %193 = vmatprep.subr.mxu0 0.0
  %194 = vmatpush1.msra.mxu0 0.0
  %195 = vmatprep.subr.mxu0 0.0
  %196 = vmatpush1.msra.mxu0 0.0
  %197 = vmatprep.subr.mxu0 0.0
  %198 = vmatpush1.msra.mxu0 0.0
  %199 = vmatprep.subr.mxu0 0.0
  %200 = vmatpush1.msra.mxu0 %v155
  %201 = vmatprep.subr.mxu0 0.0
  %202 = vmatpush1.msra.mxu0 %v154
  %203 = vmatprep.subr.mxu0 0.0
  %204 = vmatpush1.msra.mxu0 %v153
  %205 = vmatprep.subr.mxu0 0.0
  %206 = vmatpush1.msra.mxu0 %v152
  %207 = vmatprep.subr.mxu0 0.0
  %208 = vmatpush2.msra.mxu0 0.0
  %209 = vmatprep.subr.mxu0 0.0
  %210 = vmatpush2.msra.mxu0 0.0
  %211 = vmatprep.subr.mxu0 0.0
  %212 = vmatpush2.msra.mxu0 0.0
  %213 = vmatprep.subr.mxu0 0.0
  %214 = vmatpush2.msra.mxu0 0.0
  %215 = vmatprep.subr.mxu0 0.0
  %216 = vmatpush2.msra.mxu0 0.0
  %217 = vmatprep.subr.mxu0 0.0
  %218 = vmatpush2.msra.mxu0 0.0
  %219 = vmatprep.subr.mxu0 0.0
  %220 = vmatpush2.msra.mxu0 0.0
  %221 = vmatprep.subr.mxu0 0.0
  %222 = vmatpush2.msra.mxu0 0.0
  %223 = vmatprep.subr.mxu0 0.0
  %224 = vmatpush2.msra.mxu0 0.0
  %225 = vmatprep.subr.mxu0 0.0
  %226 = vmatpush2.msra.mxu0 0.0
  %227 = vmatprep.subr.mxu0 0.0
  %228 = vmatpush2.msra.mxu0 0.0
  %229 = vmatprep.subr.mxu0 0.0
  %230 = vmatpush2.msra.mxu0 0.0
  %231 = vmatprep.subr.mxu0 0.0
  %232 = vmatpush2.msra.mxu0 0.0
  %233 = vmatprep.subr.mxu0 0.0
  %234 = vmatpush2.msra.mxu0 0.0
  %235 = vmatprep.subr.mxu0 0.0
  %236 = vmatpush2.msra.mxu0 0.0
  %237 = vmatprep.subr.mxu0 0.0
  %238 = vmatpush2.msra.mxu0 0.0
  %239 = vmatprep.mubr.f32.mxu0 0.0
  %240 = vmatmul.mubr.f32.gmra.mxu0 %v158
  %v241 = vpop.f32.mrf.mxu0
  %v242 = vadd.f32 0.0, %v241
  %v243 = vpop.f32.mrf.mxu0
  %244 = vmatprep.mubr.f32.mxu0 0.0
  %245 = vmatmul.mubr.f32.gmra.mxu0 %v161
  %v246 = vpop.f32.mrf.mxu0
  %v247 = vadd.f32 0.0, %v246
  %v248 = vpop.f32.mrf.mxu0
  %249 = vmatprep.mubr.f32.mxu0 0.0
  %250 = vmatmul.mubr.f32.gmra.mxu0 %v164
  %v251 = vpop.f32.mrf.mxu0
  %v252 = vadd.f32 0.0, %v251
  %v253 = vpop.f32.mrf.mxu0
  %254 = vmatprep.mubr.f32.mxu0 0.0
  %255 = vmatmul.mubr.f32.gmra.mxu0 %v167
  %v256 = vpop.f32.mrf.mxu0
  %v257 = vadd.f32 0.0, %v256
  %v258 = vpop.f32.mrf.mxu0
  %259 = vmatprep.mubr.f32.mxu0 0.0
  %260 = vmatmul.mubr.f32.gmra.mxu0 %v170
  %v261 = vpop.f32.mrf.mxu0
  %v262 = vadd.f32 0.0, %v261
  %v263 = vpop.f32.mrf.mxu0
  %264 = vmatprep.mubr.f32.mxu0 0.0
  %265 = vmatmul.mubr.f32.gmra.mxu0 %v173
  %v266 = vpop.f32.mrf.mxu0
  %v267 = vadd.f32 0.0, %v266
  %v268 = vpop.f32.mrf.mxu0
  %269 = vdwg.mxu0
  %v270 = vld [vmem:[%s3] sm:$0xff]
  %v271 = vld [vmem:[%s3 + $0x8] sm:$0xff]
  %v272 = vld [vmem:[%s3 + $0x10] sm:$0xff]
  %v273 = vld [vmem:[%s3 + $0x18] sm:$0xff]
  %v274 = vld [vmem:[%s3 + $0x20] sm:$0xff]
  %v275 = vld [vmem:[%s3 + $0x28] sm:$0xff]
  %vm276 = vcmask 392192
  %v278 = vsel %vm276, %v270, 0
  %v281 = vsel %vm276, %v271, 0
  %v284 = vsel %vm276, %v272, 0
  %v287 = vsel %vm276, %v273, 0
  %v290 = vsel %vm276, %v274, 0
  %v293 = vsel %vm276, %v275, 0
  %295 = vmatprep.subr.mxu0 0.0
  %296 = vmatpush1.msra.mxu0 0.0
  %297 = vmatprep.subr.mxu0 0.0
  %298 = vmatpush1.msra.mxu0 0.0
  %299 = vmatprep.subr.mxu0 0.0
  %300 = vmatpush1.msra.mxu0 0.0
  %301 = vmatprep.subr.mxu0 0.0
  %302 = vmatpush1.msra.mxu0 0.0
  %303 = vmatprep.subr.mxu0 0.0
  %304 = vmatpush1.msra.mxu0 0.0
  %305 = vmatprep.subr.mxu0 0.0
  %306 = vmatpush1.msra.mxu0 0.0
  %307 = vmatprep.subr.mxu0 0.0
  %308 = vmatpush1.msra.mxu0 0.0
  %309 = vmatprep.subr.mxu0 0.0
  %310 = vmatpush1.msra.mxu0 0.0
  %311 = vmatprep.subr.mxu0 0.0
  %312 = vmatpush1.msra.mxu0 0.0
  %313 = vmatprep.subr.mxu0 0.0
  %314 = vmatpush1.msra.mxu0 0.0
  %315 = vmatprep.subr.mxu0 0.0
  %316 = vmatpush1.msra.mxu0 %v267
  %317 = vmatprep.subr.mxu0 0.0
  %318 = vmatpush1.msra.mxu0 %v262
  %319 = vmatprep.subr.mxu0 0.0
  %320 = vmatpush1.msra.mxu0 %v257
  %321 = vmatprep.subr.mxu0 0.0
  %322 = vmatpush1.msra.mxu0 %v252
  %323 = vmatprep.subr.mxu0 0.0
  %324 = vmatpush1.msra.mxu0 %v247
  %325 = vmatprep.subr.mxu0 0.0
  %326 = vmatpush1.msra.mxu0 %v242
  %327 = vmatprep.subr.mxu0 0.0
  %328 = vmatpush2.msra.mxu0 0.0
  %329 = vmatprep.subr.mxu0 0.0
  %330 = vmatpush2.msra.mxu0 0.0
  %331 = vmatprep.subr.mxu0 0.0
  %332 = vmatpush2.msra.mxu0 0.0
  %333 = vmatprep.subr.mxu0 0.0
  %334 = vmatpush2.msra.mxu0 0.0
  %335 = vmatprep.subr.mxu0 0.0
  %336 = vmatpush2.msra.mxu0 0.0
  %337 = vmatprep.subr.mxu0 0.0
  %338 = vmatpush2.msra.mxu0 0.0
  %339 = vmatprep.subr.mxu0 0.0
  %340 = vmatpush2.msra.mxu0 0.0
  %341 = vmatprep.subr.mxu0 0.0
  %342 = vmatpush2.msra.mxu0 0.0
  %343 = vmatprep.subr.mxu0 0.0
  %344 = vmatpush2.msra.mxu0 0.0
  %345 = vmatprep.subr.mxu0 0.0
  %346 = vmatpush2.msra.mxu0 0.0
  %347 = vmatprep.subr.mxu0 0.0
  %348 = vmatpush2.msra.mxu0 0.0
  %349 = vmatprep.subr.mxu0 0.0
  %350 = vmatpush2.msra.mxu0 0.0
  %351 = vmatprep.subr.mxu0 0.0
  %352 = vmatpush2.msra.mxu0 0.0
  %353 = vmatprep.subr.mxu0 0.0
  %354 = vmatpush2.msra.mxu0 0.0
  %355 = vmatprep.subr.mxu0 0.0
  %356 = vmatpush2.msra.mxu0 0.0
  %357 = vmatprep.subr.mxu0 0.0
  %358 = vmatpush2.msra.mxu0 0.0
  %359 = vmatprep.mubr.f32.mxu0 0.0
  %360 = vmatmul.mubr.f32.gmra.mxu0 %v278
  %v361 = vpop.f32.mrf.mxu0
  %v362 = vadd.f32 0.0, %v361
  %v363 = vpop.f32.mrf.mxu0
  %364 = vmatprep.mubr.f32.mxu0 0.0
  %365 = vmatmul.mubr.f32.gmra.mxu0 %v281
  %v366 = vpop.f32.mrf.mxu0
  %v367 = vadd.f32 0.0, %v366
  %v368 = vpop.f32.mrf.mxu0
  %369 = vmatprep.mubr.f32.mxu0 0.0
  %370 = vmatmul.mubr.f32.gmra.mxu0 %v284
  %v371 = vpop.f32.mrf.mxu0
  %v372 = vadd.f32 0.0, %v371
  %v373 = vpop.f32.mrf.mxu0
  %374 = vmatprep.mubr.f32.mxu0 0.0
  %375 = vmatmul.mubr.f32.gmra.mxu0 %v287
  %v376 = vpop.f32.mrf.mxu0
  %v377 = vadd.f32 0.0, %v376
  %v378 = vpop.f32.mrf.mxu0
  %379 = vmatprep.mubr.f32.mxu0 0.0
  %380 = vmatmul.mubr.f32.gmra.mxu0 %v290
  %v381 = vpop.f32.mrf.mxu0
  %v382 = vadd.f32 0.0, %v381
  %v383 = vpop.f32.mrf.mxu0
  %384 = vmatprep.mubr.f32.mxu0 0.0
  %385 = vmatmul.mubr.f32.gmra.mxu0 %v293
  %v386 = vpop.f32.mrf.mxu0
  %v387 = vadd.f32 0.0, %v386
  %v388 = vpop.f32.mrf.mxu0
  %389 = vdwg.mxu0
  %v390 = vld [vmem:[%s7] sm:$0xff]
  %v391 = vld [vmem:[%s7 + $0x8] sm:$0xff]
  %v392 = vld [vmem:[%s7 + $0x10] sm:$0xff]
  %v393 = vld [vmem:[%s7 + $0x18] sm:$0xff]
  %v394 = vld [vmem:[%s7 + $0x20] sm:$0xff]
  %v395 = vld [vmem:[%s7 + $0x28] sm:$0xff]
  %v396 = vmul.f32 %v362, %v390
  %v397 = vmul.f32 %v367, %v391
  %v398 = vmul.f32 %v372, %v392
  %v399 = vmul.f32 %v377, %v393
  %v400 = vmul.f32 %v382, %v394
  %v401 = vmul.f32 %v387, %v395
  %v402 = vld [vmem:[%s9] sm:$0xff]
  %v403 = vld [vmem:[%s9 + $0x8] sm:$0xff]
  %v404 = vld [vmem:[%s9 + $0x10] sm:$0xff]
  %v405 = vld [vmem:[%s9 + $0x18] sm:$0xff]
  %v406 = vld [vmem:[%s9 + $0x20] sm:$0xff]
  %v407 = vld [vmem:[%s9 + $0x28] sm:$0xff]
  %v408 = vadd.f32 %v396, %v402
  %v409 = vadd.f32 %v397, %v403
  %v410 = vadd.f32 %v398, %v404
  %v411 = vadd.f32 %v399, %v405
  %v412 = vadd.f32 %v400, %v406
  %v413 = vadd.f32 %v401, %v407
  %v414 = vtanh.pop %v408
  %v415 = vtanh.pop %v409
  %v416 = vtanh.pop %v410
  %v417 = vtanh.pop %v411
  %v418 = vtanh.pop %v412
  %v419 = vtanh.pop %v413
  %s420 = scalar_lea.vmem %s1, 48
  %v421 = vld [vmem:[%s420] sm:$0xff]
  %v422 = vld [vmem:[%s420 + $0x8] sm:$0xff]
  %v423 = vld [vmem:[%s420 + $0x10] sm:$0xff]
  %v424 = vld [vmem:[%s420 + $0x18] sm:$0xff]
  %v425 = vld [vmem:[%s420 + $0x20] sm:$0xff]
  %v426 = vld [vmem:[%s420 + $0x28] sm:$0xff]
  %v427 = vld [vmem:[%s13] sm:$0xff]
  %v428 = vld [vmem:[%s13 + $0x8] sm:$0xff]
  %v429 = vld [vmem:[%s13 + $0x10] sm:$0xff]
  %v430 = vld [vmem:[%s13 + $0x18] sm:$0xff]
  %v432 = vsel %vm156, %v421, 0
  %v435 = vsel %vm156, %v422, 0
  %v438 = vsel %vm156, %v423, 0
  %v441 = vsel %vm156, %v424, 0
  %v444 = vsel %vm156, %v425, 0
  %v447 = vsel %vm156, %v426, 0
  %449 = vmatprep.subr.mxu0 0.0
  %450 = vmatpush1.msra.mxu0 0.0
  %451 = vmatprep.subr.mxu0 0.0
  %452 = vmatpush1.msra.mxu0 0.0
  %453 = vmatprep.subr.mxu0 0.0
  %454 = vmatpush1.msra.mxu0 0.0
  %455 = vmatprep.subr.mxu0 0.0
  %456 = vmatpush1.msra.mxu0 0.0
  %457 = vmatprep.subr.mxu0 0.0
  %458 = vmatpush1.msra.mxu0 0.0
  %459 = vmatprep.subr.mxu0 0.0
  %460 = vmatpush1.msra.mxu0 0.0
  %461 = vmatprep.subr.mxu0 0.0
  %462 = vmatpush1.msra.mxu0 0.0
  %463 = vmatprep.subr.mxu0 0.0
  %464 = vmatpush1.msra.mxu0 0.0
  %465 = vmatprep.subr.mxu0 0.0
  %466 = vmatpush1.msra.mxu0 0.0
  %467 = vmatprep.subr.mxu0 0.0
  %468 = vmatpush1.msra.mxu0 0.0
  %469 = vmatprep.subr.mxu0 0.0
  %470 = vmatpush1.msra.mxu0 0.0
  %471 = vmatprep.subr.mxu0 0.0
  %472 = vmatpush1.msra.mxu0 0.0
  %473 = vmatprep.subr.mxu0 0.0
  %474 = vmatpush1.msra.mxu0 %v430
  %475 = vmatprep.subr.mxu0 0.0
  %476 = vmatpush1.msra.mxu0 %v429
  %477 = vmatprep.subr.mxu0 0.0
  %478 = vmatpush1.msra.mxu0 %v428
  %479 = vmatprep.subr.mxu0 0.0
  %480 = vmatpush1.msra.mxu0 %v427
  %481 = vmatprep.subr.mxu0 0.0
  %482 = vmatpush2.msra.mxu0 0.0
  %483 = vmatprep.subr.mxu0 0.0
  %484 = vmatpush2.msra.mxu0 0.0
  %485 = vmatprep.subr.mxu0 0.0
  %486 = vmatpush2.msra.mxu0 0.0
  %487 = vmatprep.subr.mxu0 0.0
  %488 = vmatpush2.msra.mxu0 0.0
  %489 = vmatprep.subr.mxu0 0.0
  %490 = vmatpush2.msra.mxu0 0.0
  %491 = vmatprep.subr.mxu0 0.0
  %492 = vmatpush2.msra.mxu0 0.0
  %493 = vmatprep.subr.mxu0 0.0
  %494 = vmatpush2.msra.mxu0 0.0
  %495 = vmatprep.subr.mxu0 0.0
  %496 = vmatpush2.msra.mxu0 0.0
  %497 = vmatprep.subr.mxu0 0.0
  %498 = vmatpush2.msra.mxu0 0.0
  %499 = vmatprep.subr.mxu0 0.0
  %500 = vmatpush2.msra.mxu0 0.0
  %501 = vmatprep.subr.mxu0 0.0
  %502 = vmatpush2.msra.mxu0 0.0
  %503 = vmatprep.subr.mxu0 0.0
  %504 = vmatpush2.msra.mxu0 0.0
  %505 = vmatprep.subr.mxu0 0.0
  %506 = vmatpush2.msra.mxu0 0.0
  %507 = vmatprep.subr.mxu0 0.0
  %508 = vmatpush2.msra.mxu0 0.0
  %509 = vmatprep.subr.mxu0 0.0
  %510 = vmatpush2.msra.mxu0 0.0
  %511 = vmatprep.subr.mxu0 0.0
  %512 = vmatpush2.msra.mxu0 0.0
  %513 = vmatprep.mubr.f32.mxu0 0.0
  %514 = vmatmul.mubr.f32.gmra.mxu0 %v432
  %v515 = vpop.f32.mrf.mxu0
  %v516 = vadd.f32 0.0, %v515
  %v517 = vpop.f32.mrf.mxu0
  %518 = vmatprep.mubr.f32.mxu0 0.0
  %519 = vmatmul.mubr.f32.gmra.mxu0 %v435
  %v520 = vpop.f32.mrf.mxu0
  %v521 = vadd.f32 0.0, %v520
  %v522 = vpop.f32.mrf.mxu0
  %523 = vmatprep.mubr.f32.mxu0 0.0
  %524 = vmatmul.mubr.f32.gmra.mxu0 %v438
  %v525 = vpop.f32.mrf.mxu0
  %v526 = vadd.f32 0.0, %v525
  %v527 = vpop.f32.mrf.mxu0
  %528 = vmatprep.mubr.f32.mxu0 0.0
  %529 = vmatmul.mubr.f32.gmra.mxu0 %v441
  %v530 = vpop.f32.mrf.mxu0
  %v531 = vadd.f32 0.0, %v530
  %v532 = vpop.f32.mrf.mxu0
  %533 = vmatprep.mubr.f32.mxu0 0.0
  %534 = vmatmul.mubr.f32.gmra.mxu0 %v444
  %v535 = vpop.f32.mrf.mxu0
  %v536 = vadd.f32 0.0, %v535
  %v537 = vpop.f32.mrf.mxu0
  %538 = vmatprep.mubr.f32.mxu0 0.0
  %539 = vmatmul.mubr.f32.gmra.mxu0 %v447
  %v540 = vpop.f32.mrf.mxu0
  %v541 = vadd.f32 0.0, %v540
  %v542 = vpop.f32.mrf.mxu0
  %543 = vdwg.mxu0
  %v544 = vld [vmem:[%s11] sm:$0xff]
  %v545 = vld [vmem:[%s11 + $0x8] sm:$0xff]
  %v546 = vld [vmem:[%s11 + $0x10] sm:$0xff]
  %v547 = vld [vmem:[%s11 + $0x18] sm:$0xff]
  %v548 = vld [vmem:[%s11 + $0x20] sm:$0xff]
  %v549 = vld [vmem:[%s11 + $0x28] sm:$0xff]
  %v551 = vsel %vm276, %v544, 0
  %v554 = vsel %vm276, %v545, 0
  %v557 = vsel %vm276, %v546, 0
  %v560 = vsel %vm276, %v547, 0
  %v563 = vsel %vm276, %v548, 0
  %v566 = vsel %vm276, %v549, 0
  %568 = vmatprep.subr.mxu0 0.0
  %569 = vmatpush1.msra.mxu0 0.0
  %570 = vmatprep.subr.mxu0 0.0
  %571 = vmatpush1.msra.mxu0 0.0
  %572 = vmatprep.subr.mxu0 0.0
  %573 = vmatpush1.msra.mxu0 0.0
  %574 = vmatprep.subr.mxu0 0.0
  %575 = vmatpush1.msra.mxu0 0.0
  %576 = vmatprep.subr.mxu0 0.0
  %577 = vmatpush1.msra.mxu0 0.0
  %578 = vmatprep.subr.mxu0 0.0
  %579 = vmatpush1.msra.mxu0 0.0
  %580 = vmatprep.subr.mxu0 0.0
  %581 = vmatpush1.msra.mxu0 0.0
  %582 = vmatprep.subr.mxu0 0.0
  %583 = vmatpush1.msra.mxu0 0.0
  %584 = vmatprep.subr.mxu0 0.0
  %585 = vmatpush1.msra.mxu0 0.0
  %586 = vmatprep.subr.mxu0 0.0
  %587 = vmatpush1.msra.mxu0 0.0
  %588 = vmatprep.subr.mxu0 0.0
  %589 = vmatpush1.msra.mxu0 %v541
  %590 = vmatprep.subr.mxu0 0.0
  %591 = vmatpush1.msra.mxu0 %v536
  %592 = vmatprep.subr.mxu0 0.0
  %593 = vmatpush1.msra.mxu0 %v531
  %594 = vmatprep.subr.mxu0 0.0
  %595 = vmatpush1.msra.mxu0 %v526
  %596 = vmatprep.subr.mxu0 0.0
  %597 = vmatpush1.msra.mxu0 %v521
  %598 = vmatprep.subr.mxu0 0.0
  %599 = vmatpush1.msra.mxu0 %v516
  %600 = vmatprep.subr.mxu0 0.0
  %601 = vmatpush2.msra.mxu0 0.0
  %602 = vmatprep.subr.mxu0 0.0
  %603 = vmatpush2.msra.mxu0 0.0
  %604 = vmatprep.subr.mxu0 0.0
  %605 = vmatpush2.msra.mxu0 0.0
  %606 = vmatprep.subr.mxu0 0.0
  %607 = vmatpush2.msra.mxu0 0.0
  %608 = vmatprep.subr.mxu0 0.0
  %609 = vmatpush2.msra.mxu0 0.0
  %610 = vmatprep.subr.mxu0 0.0
  %611 = vmatpush2.msra.mxu0 0.0
  %612 = vmatprep.subr.mxu0 0.0
  %613 = vmatpush2.msra.mxu0 0.0
  %614 = vmatprep.subr.mxu0 0.0
  %615 = vmatpush2.msra.mxu0 0.0
  %616 = vmatprep.subr.mxu0 0.0
  %617 = vmatpush2.msra.mxu0 0.0
  %618 = vmatprep.subr.mxu0 0.0
  %619 = vmatpush2.msra.mxu0 0.0
  %620 = vmatprep.subr.mxu0 0.0
  %621 = vmatpush2.msra.mxu0 0.0
  %622 = vmatprep.subr.mxu0 0.0
  %623 = vmatpush2.msra.mxu0 0.0
  %624 = vmatprep.subr.mxu0 0.0
  %625 = vmatpush2.msra.mxu0 0.0
  %626 = vmatprep.subr.mxu0 0.0
  %627 = vmatpush2.msra.mxu0 0.0
  %628 = vmatprep.subr.mxu0 0.0
  %629 = vmatpush2.msra.mxu0 0.0
  %630 = vmatprep.subr.mxu0 0.0
  %631 = vmatpush2.msra.mxu0 0.0
  %632 = vmatprep.mubr.f32.mxu0 0.0
  %633 = vmatmul.mubr.f32.gmra.mxu0 %v551
  %v634 = vpop.f32.mrf.mxu0
  %v635 = vadd.f32 0.0, %v634
  %v636 = vpop.f32.mrf.mxu0
  %637 = vmatprep.mubr.f32.mxu0 0.0
  %638 = vmatmul.mubr.f32.gmra.mxu0 %v554
  %v639 = vpop.f32.mrf.mxu0
  %v640 = vadd.f32 0.0, %v639
  %v641 = vpop.f32.mrf.mxu0
  %642 = vmatprep.mubr.f32.mxu0 0.0
  %643 = vmatmul.mubr.f32.gmra.mxu0 %v557
  %v644 = vpop.f32.mrf.mxu0
  %v645 = vadd.f32 0.0, %v644
  %v646 = vpop.f32.mrf.mxu0
  %647 = vmatprep.mubr.f32.mxu0 0.0
  %648 = vmatmul.mubr.f32.gmra.mxu0 %v560
  %v649 = vpop.f32.mrf.mxu0
  %v650 = vadd.f32 0.0, %v649
  %v651 = vpop.f32.mrf.mxu0
  %652 = vmatprep.mubr.f32.mxu0 0.0
  %653 = vmatmul.mubr.f32.gmra.mxu0 %v563
  %v654 = vpop.f32.mrf.mxu0
  %v655 = vadd.f32 0.0, %v654
  %v656 = vpop.f32.mrf.mxu0
  %657 = vmatprep.mubr.f32.mxu0 0.0
  %658 = vmatmul.mubr.f32.gmra.mxu0 %v566
  %v659 = vpop.f32.mrf.mxu0
  %v660 = vadd.f32 0.0, %v659
  %v661 = vpop.f32.mrf.mxu0
  %662 = vdwg.mxu0
  %v663 = vld [vmem:[%s15] sm:$0xff]
  %v664 = vld [vmem:[%s15 + $0x8] sm:$0xff]
  %v665 = vld [vmem:[%s15 + $0x10] sm:$0xff]
  %v666 = vld [vmem:[%s15 + $0x18] sm:$0xff]
  %v667 = vld [vmem:[%s15 + $0x20] sm:$0xff]
  %v668 = vld [vmem:[%s15 + $0x28] sm:$0xff]
  %v669 = vmul.f32 %v635, %v663
  %v670 = vmul.f32 %v640, %v664
  %v671 = vmul.f32 %v645, %v665
  %v672 = vmul.f32 %v650, %v666
  %v673 = vmul.f32 %v655, %v667
  %v674 = vmul.f32 %v660, %v668
  %v675 = vld [vmem:[%s17] sm:$0xff]
  %v676 = vld [vmem:[%s17 + $0x8] sm:$0xff]
  %v677 = vld [vmem:[%s17 + $0x10] sm:$0xff]
  %v678 = vld [vmem:[%s17 + $0x18] sm:$0xff]
  %v679 = vld [vmem:[%s17 + $0x20] sm:$0xff]
  %v680 = vld [vmem:[%s17 + $0x28] sm:$0xff]
  %v681 = vadd.f32 %v669, %v675
  %v682 = vadd.f32 %v670, %v676
  %v683 = vadd.f32 %v671, %v677
  %v684 = vadd.f32 %v672, %v678
  %v685 = vadd.f32 %v673, %v679
  %v686 = vadd.f32 %v674, %v680
  %v687 = vtanh.pop %v681
  %v688 = vtanh.pop %v682
  %v689 = vtanh.pop %v683
  %v690 = vtanh.pop %v684
  %v691 = vtanh.pop %v685
  %v692 = vtanh.pop %v686
  %v693 = vld [vmem:[%s21] sm:$0xff]
  %v694 = vld [vmem:[%s21 + $0x8] sm:$0xff]
  %v695 = vld [vmem:[%s21 + $0x10] sm:$0xff]
  %v696 = vld [vmem:[%s21 + $0x18] sm:$0xff]
  %v697 = vld [vmem:[%s21 + $0x20] sm:$0xff]
  %v698 = vld [vmem:[%s21 + $0x28] sm:$0xff]
  %v699 = vld [vmem:[%s21 + $0x30] sm:$0xff]
  %v700 = vld [vmem:[%s21 + $0x38] sm:$0xff]
  %vm701 = vcmask 523264
  %v703 = vsel %vm701, %v414, 0
  %v706 = vsel %vm701, %v415, 0
  %v709 = vsel %vm701, %v416, 0
  %v712 = vsel %vm701, %v417, 0
  %v715 = vsel %vm701, %v418, 0
  %v718 = vsel %vm701, %v419, 0
  %720 = vmatprep.subr.mxu0 0.0
  %721 = vmatpush1.msra.mxu0 0.0
  %722 = vmatprep.subr.mxu0 0.0
  %723 = vmatpush1.msra.mxu0 0.0
  %724 = vmatprep.subr.mxu0 0.0
  %725 = vmatpush1.msra.mxu0 0.0
  %726 = vmatprep.subr.mxu0 0.0
  %727 = vmatpush1.msra.mxu0 0.0
  %728 = vmatprep.subr.mxu0 0.0
  %729 = vmatpush1.msra.mxu0 0.0
  %730 = vmatprep.subr.mxu0 0.0
  %731 = vmatpush1.msra.mxu0 0.0
  %732 = vmatprep.subr.mxu0 0.0
  %733 = vmatpush1.msra.mxu0 0.0
  %734 = vmatprep.subr.mxu0 0.0
  %735 = vmatpush1.msra.mxu0 0.0
  %736 = vmatprep.subr.mxu0 0.0
  %737 = vmatpush1.msra.mxu0 %v700
  %738 = vmatprep.subr.mxu0 0.0
  %739 = vmatpush1.msra.mxu0 %v699
  %740 = vmatprep.subr.mxu0 0.0
  %741 = vmatpush1.msra.mxu0 %v698
  %742 = vmatprep.subr.mxu0 0.0
  %743 = vmatpush1.msra.mxu0 %v697
  %744 = vmatprep.subr.mxu0 0.0
  %745 = vmatpush1.msra.mxu0 %v696
  %746 = vmatprep.subr.mxu0 0.0
  %747 = vmatpush1.msra.mxu0 %v695
  %748 = vmatprep.subr.mxu0 0.0
  %749 = vmatpush1.msra.mxu0 %v694
  %750 = vmatprep.subr.mxu0 0.0
  %751 = vmatpush1.msra.mxu0 %v693
  %752 = vmatprep.subr.mxu0 0.0
  %753 = vmatpush2.msra.mxu0 0.0
  %754 = vmatprep.subr.mxu0 0.0
  %755 = vmatpush2.msra.mxu0 0.0
  %756 = vmatprep.subr.mxu0 0.0
  %757 = vmatpush2.msra.mxu0 0.0
  %758 = vmatprep.subr.mxu0 0.0
  %759 = vmatpush2.msra.mxu0 0.0
  %760 = vmatprep.subr.mxu0 0.0
  %761 = vmatpush2.msra.mxu0 0.0
  %762 = vmatprep.subr.mxu0 0.0
  %763 = vmatpush2.msra.mxu0 0.0
  %764 = vmatprep.subr.mxu0 0.0
  %765 = vmatpush2.msra.mxu0 0.0
  %766 = vmatprep.subr.mxu0 0.0
  %767 = vmatpush2.msra.mxu0 0.0
  %768 = vmatprep.subr.mxu0 0.0
  %769 = vmatpush2.msra.mxu0 0.0
  %770 = vmatprep.subr.mxu0 0.0
  %771 = vmatpush2.msra.mxu0 0.0
  %772 = vmatprep.subr.mxu0 0.0
  %773 = vmatpush2.msra.mxu0 0.0
  %774 = vmatprep.subr.mxu0 0.0
  %775 = vmatpush2.msra.mxu0 0.0
  %776 = vmatprep.subr.mxu0 0.0
  %777 = vmatpush2.msra.mxu0 0.0
  %778 = vmatprep.subr.mxu0 0.0
  %779 = vmatpush2.msra.mxu0 0.0
  %780 = vmatprep.subr.mxu0 0.0
  %781 = vmatpush2.msra.mxu0 0.0
  %782 = vmatprep.subr.mxu0 0.0
  %783 = vmatpush2.msra.mxu0 0.0
  %784 = vmatprep.mubr.f32.mxu0 0.0
  %785 = vmatmul.mubr.f32.gmra.mxu0 %v703
  %v786 = vpop.f32.mrf.mxu0
  %v787 = vadd.f32 0.0, %v786
  %v788 = vpop.f32.mrf.mxu0
  %789 = vmatprep.mubr.f32.mxu0 0.0
  %790 = vmatmul.mubr.f32.gmra.mxu0 %v706
  %v791 = vpop.f32.mrf.mxu0
  %v792 = vadd.f32 0.0, %v791
  %v793 = vpop.f32.mrf.mxu0
  %794 = vmatprep.mubr.f32.mxu0 0.0
  %795 = vmatmul.mubr.f32.gmra.mxu0 %v709
  %v796 = vpop.f32.mrf.mxu0
  %v797 = vadd.f32 0.0, %v796
  %v798 = vpop.f32.mrf.mxu0
  %799 = vmatprep.mubr.f32.mxu0 0.0
  %800 = vmatmul.mubr.f32.gmra.mxu0 %v712
  %v801 = vpop.f32.mrf.mxu0
  %v802 = vadd.f32 0.0, %v801
  %v803 = vpop.f32.mrf.mxu0
  %804 = vmatprep.mubr.f32.mxu0 0.0
  %805 = vmatmul.mubr.f32.gmra.mxu0 %v715
  %v806 = vpop.f32.mrf.mxu0
  %v807 = vadd.f32 0.0, %v806
  %v808 = vpop.f32.mrf.mxu0
  %809 = vmatprep.mubr.f32.mxu0 0.0
  %810 = vmatmul.mubr.f32.gmra.mxu0 %v718
  %v811 = vpop.f32.mrf.mxu0
  %v812 = vadd.f32 0.0, %v811
  %v813 = vpop.f32.mrf.mxu0
  %814 = vdwg.mxu0
  %v815 = vld [vmem:[%s19] sm:$0xff]
  %v816 = vld [vmem:[%s19 + $0x8] sm:$0xff]
  %v817 = vld [vmem:[%s19 + $0x10] sm:$0xff]
  %v818 = vld [vmem:[%s19 + $0x18] sm:$0xff]
  %v819 = vld [vmem:[%s19 + $0x20] sm:$0xff]
  %v820 = vld [vmem:[%s19 + $0x28] sm:$0xff]
  %v822 = vsel %vm276, %v815, 0
  %v825 = vsel %vm276, %v816, 0
  %v828 = vsel %vm276, %v817, 0
  %v831 = vsel %vm276, %v818, 0
  %v834 = vsel %vm276, %v819, 0
  %v837 = vsel %vm276, %v820, 0
  %839 = vmatprep.subr.mxu0 0.0
  %840 = vmatpush1.msra.mxu0 0.0
  %841 = vmatprep.subr.mxu0 0.0
  %842 = vmatpush1.msra.mxu0 0.0
  %843 = vmatprep.subr.mxu0 0.0
  %844 = vmatpush1.msra.mxu0 0.0
  %845 = vmatprep.subr.mxu0 0.0
  %846 = vmatpush1.msra.mxu0 0.0
  %847 = vmatprep.subr.mxu0 0.0
  %848 = vmatpush1.msra.mxu0 0.0
  %849 = vmatprep.subr.mxu0 0.0
  %850 = vmatpush1.msra.mxu0 0.0
  %851 = vmatprep.subr.mxu0 0.0
  %852 = vmatpush1.msra.mxu0 0.0
  %853 = vmatprep.subr.mxu0 0.0
  %854 = vmatpush1.msra.mxu0 0.0
  %855 = vmatprep.subr.mxu0 0.0
  %856 = vmatpush1.msra.mxu0 0.0
  %857 = vmatprep.subr.mxu0 0.0
  %858 = vmatpush1.msra.mxu0 0.0
  %859 = vmatprep.subr.mxu0 0.0
  %860 = vmatpush1.msra.mxu0 %v812
  %861 = vmatprep.subr.mxu0 0.0
  %862 = vmatpush1.msra.mxu0 %v807
  %863 = vmatprep.subr.mxu0 0.0
  %864 = vmatpush1.msra.mxu0 %v802
  %865 = vmatprep.subr.mxu0 0.0
  %866 = vmatpush1.msra.mxu0 %v797
  %867 = vmatprep.subr.mxu0 0.0
  %868 = vmatpush1.msra.mxu0 %v792
  %869 = vmatprep.subr.mxu0 0.0
  %870 = vmatpush1.msra.mxu0 %v787
  %871 = vmatprep.subr.mxu0 0.0
  %872 = vmatpush2.msra.mxu0 0.0
  %873 = vmatprep.subr.mxu0 0.0
  %874 = vmatpush2.msra.mxu0 0.0
  %875 = vmatprep.subr.mxu0 0.0
  %876 = vmatpush2.msra.mxu0 0.0
  %877 = vmatprep.subr.mxu0 0.0
  %878 = vmatpush2.msra.mxu0 0.0
  %879 = vmatprep.subr.mxu0 0.0
  %880 = vmatpush2.msra.mxu0 0.0
  %881 = vmatprep.subr.mxu0 0.0
  %882 = vmatpush2.msra.mxu0 0.0
  %883 = vmatprep.subr.mxu0 0.0
  %884 = vmatpush2.msra.mxu0 0.0
  %885 = vmatprep.subr.mxu0 0.0
  %886 = vmatpush2.msra.mxu0 0.0
  %887 = vmatprep.subr.mxu0 0.0
  %888 = vmatpush2.msra.mxu0 0.0
  %889 = vmatprep.subr.mxu0 0.0
  %890 = vmatpush2.msra.mxu0 0.0
  %891 = vmatprep.subr.mxu0 0.0
  %892 = vmatpush2.msra.mxu0 0.0
  %893 = vmatprep.subr.mxu0 0.0
  %894 = vmatpush2.msra.mxu0 0.0
  %895 = vmatprep.subr.mxu0 0.0
  %896 = vmatpush2.msra.mxu0 0.0
  %897 = vmatprep.subr.mxu0 0.0
  %898 = vmatpush2.msra.mxu0 0.0
  %899 = vmatprep.subr.mxu0 0.0
  %900 = vmatpush2.msra.mxu0 0.0
  %901 = vmatprep.subr.mxu0 0.0
  %902 = vmatpush2.msra.mxu0 0.0
  %903 = vmatprep.mubr.f32.mxu0 0.0
  %904 = vmatmul.mubr.f32.gmra.mxu0 %v822
  %v905 = vpop.f32.mrf.mxu0
  %v906 = vadd.f32 0.0, %v905
  %v907 = vpop.f32.mrf.mxu0
  %908 = vmatprep.mubr.f32.mxu0 0.0
  %909 = vmatmul.mubr.f32.gmra.mxu0 %v825
  %v910 = vpop.f32.mrf.mxu0
  %v911 = vadd.f32 0.0, %v910
  %v912 = vpop.f32.mrf.mxu0
  %913 = vmatprep.mubr.f32.mxu0 0.0
  %914 = vmatmul.mubr.f32.gmra.mxu0 %v828
  %v915 = vpop.f32.mrf.mxu0
  %v916 = vadd.f32 0.0, %v915
  %v917 = vpop.f32.mrf.mxu0
  %918 = vmatprep.mubr.f32.mxu0 0.0
  %919 = vmatmul.mubr.f32.gmra.mxu0 %v831
  %v920 = vpop.f32.mrf.mxu0
  %v921 = vadd.f32 0.0, %v920
  %v922 = vpop.f32.mrf.mxu0
  %923 = vmatprep.mubr.f32.mxu0 0.0
  %924 = vmatmul.mubr.f32.gmra.mxu0 %v834
  %v925 = vpop.f32.mrf.mxu0
  %v926 = vadd.f32 0.0, %v925
  %v927 = vpop.f32.mrf.mxu0
  %928 = vmatprep.mubr.f32.mxu0 0.0
  %929 = vmatmul.mubr.f32.gmra.mxu0 %v837
  %v930 = vpop.f32.mrf.mxu0
  %v931 = vadd.f32 0.0, %v930
  %v932 = vpop.f32.mrf.mxu0
  %933 = vdwg.mxu0
  %v934 = vld [vmem:[%s23] sm:$0xff]
  %v935 = vld [vmem:[%s23 + $0x8] sm:$0xff]
  %v936 = vld [vmem:[%s23 + $0x10] sm:$0xff]
  %v937 = vld [vmem:[%s23 + $0x18] sm:$0xff]
  %v938 = vld [vmem:[%s23 + $0x20] sm:$0xff]
  %v939 = vld [vmem:[%s23 + $0x28] sm:$0xff]
  %v940 = vmul.f32 %v906, %v934
  %v941 = vmul.f32 %v911, %v935
  %v942 = vmul.f32 %v916, %v936
  %v943 = vmul.f32 %v921, %v937
  %v944 = vmul.f32 %v926, %v938
  %v945 = vmul.f32 %v931, %v939
  %v946 = vld [vmem:[%s25] sm:$0xff]
  %v947 = vld [vmem:[%s25 + $0x8] sm:$0xff]
  %v948 = vld [vmem:[%s25 + $0x10] sm:$0xff]
  %v949 = vld [vmem:[%s25 + $0x18] sm:$0xff]
  %v950 = vld [vmem:[%s25 + $0x20] sm:$0xff]
  %v951 = vld [vmem:[%s25 + $0x28] sm:$0xff]
  %v952 = vadd.f32 %v940, %v946
  %v953 = vadd.f32 %v941, %v947
  %v954 = vadd.f32 %v942, %v948
  %v955 = vadd.f32 %v943, %v949
  %v956 = vadd.f32 %v944, %v950
  %v957 = vadd.f32 %v945, %v951
  %v958 = vtanh.pop %v952
  %v959 = vtanh.pop %v953
  %v960 = vtanh.pop %v954
  %v961 = vtanh.pop %v955
  %v962 = vtanh.pop %v956
  %v963 = vtanh.pop %v957
  %v964 = vld [vmem:[%s29] sm:$0xff]
  %v965 = vld [vmem:[%s29 + $0x8] sm:$0xff]
  %v966 = vld [vmem:[%s29 + $0x10] sm:$0xff]
  %v967 = vld [vmem:[%s29 + $0x18] sm:$0xff]
  %v968 = vld [vmem:[%s29 + $0x20] sm:$0xff]
  %v969 = vld [vmem:[%s29 + $0x28] sm:$0xff]
  %v970 = vld [vmem:[%s29 + $0x30] sm:$0xff]
  %v971 = vld [vmem:[%s29 + $0x38] sm:$0xff]
  %v973 = vsel %vm701, %v958, 0
  %v976 = vsel %vm701, %v959, 0
  %v979 = vsel %vm701, %v960, 0
  %v982 = vsel %vm701, %v961, 0
  %v985 = vsel %vm701, %v962, 0
  %v988 = vsel %vm701, %v963, 0
  %990 = vmatprep.subr.mxu0 0.0
  %991 = vmatpush1.msra.mxu0 0.0
  %992 = vmatprep.subr.mxu0 0.0
  %993 = vmatpush1.msra.mxu0 0.0
  %994 = vmatprep.subr.mxu0 0.0
  %995 = vmatpush1.msra.mxu0 0.0
  %996 = vmatprep.subr.mxu0 0.0
  %997 = vmatpush1.msra.mxu0 0.0
  %998 = vmatprep.subr.mxu0 0.0
  %999 = vmatpush1.msra.mxu0 0.0
  %1000 = vmatprep.subr.mxu0 0.0
  %1001 = vmatpush1.msra.mxu0 0.0
  %1002 = vmatprep.subr.mxu0 0.0
  %1003 = vmatpush1.msra.mxu0 0.0
  %1004 = vmatprep.subr.mxu0 0.0
  %1005 = vmatpush1.msra.mxu0 0.0
  %1006 = vmatprep.subr.mxu0 0.0
  %1007 = vmatpush1.msra.mxu0 %v971
  %1008 = vmatprep.subr.mxu0 0.0
  %1009 = vmatpush1.msra.mxu0 %v970
  %1010 = vmatprep.subr.mxu0 0.0
  %1011 = vmatpush1.msra.mxu0 %v969
  %1012 = vmatprep.subr.mxu0 0.0
  %1013 = vmatpush1.msra.mxu0 %v968
  %1014 = vmatprep.subr.mxu0 0.0
  %1015 = vmatpush1.msra.mxu0 %v967
  %1016 = vmatprep.subr.mxu0 0.0
  %1017 = vmatpush1.msra.mxu0 %v966
  %1018 = vmatprep.subr.mxu0 0.0
  %1019 = vmatpush1.msra.mxu0 %v965
  %1020 = vmatprep.subr.mxu0 0.0
  %1021 = vmatpush1.msra.mxu0 %v964
  %1022 = vmatprep.subr.mxu0 0.0
  %1023 = vmatpush2.msra.mxu0 0.0
  %1024 = vmatprep.subr.mxu0 0.0
  %1025 = vmatpush2.msra.mxu0 0.0
  %1026 = vmatprep.subr.mxu0 0.0
  %1027 = vmatpush2.msra.mxu0 0.0
  %1028 = vmatprep.subr.mxu0 0.0
  %1029 = vmatpush2.msra.mxu0 0.0
  %1030 = vmatprep.subr.mxu0 0.0
  %1031 = vmatpush2.msra.mxu0 0.0
  %1032 = vmatprep.subr.mxu0 0.0
  %1033 = vmatpush2.msra.mxu0 0.0
  %1034 = vmatprep.subr.mxu0 0.0
  %1035 = vmatpush2.msra.mxu0 0.0
  %1036 = vmatprep.subr.mxu0 0.0
  %1037 = vmatpush2.msra.mxu0 0.0
  %1038 = vmatprep.subr.mxu0 0.0
  %1039 = vmatpush2.msra.mxu0 0.0
  %1040 = vmatprep.subr.mxu0 0.0
  %1041 = vmatpush2.msra.mxu0 0.0
  %1042 = vmatprep.subr.mxu0 0.0
  %1043 = vmatpush2.msra.mxu0 0.0
  %1044 = vmatprep.subr.mxu0 0.0
  %1045 = vmatpush2.msra.mxu0 0.0
  %1046 = vmatprep.subr.mxu0 0.0
  %1047 = vmatpush2.msra.mxu0 0.0
  %1048 = vmatprep.subr.mxu0 0.0
  %1049 = vmatpush2.msra.mxu0 0.0
  %1050 = vmatprep.subr.mxu0 0.0
  %1051 = vmatpush2.msra.mxu0 0.0
  %1052 = vmatprep.subr.mxu0 0.0
  %1053 = vmatpush2.msra.mxu0 0.0
  %1054 = vmatprep.mubr.f32.mxu0 0.0
  %1055 = vmatmul.mubr.f32.gmra.mxu0 %v973
  %v1056 = vpop.f32.mrf.mxu0
  %v1057 = vadd.f32 0.0, %v1056
  %v1058 = vpop.f32.mrf.mxu0
  %1059 = vmatprep.mubr.f32.mxu0 0.0
  %1060 = vmatmul.mubr.f32.gmra.mxu0 %v976
  %v1061 = vpop.f32.mrf.mxu0
  %v1062 = vadd.f32 0.0, %v1061
  %v1063 = vpop.f32.mrf.mxu0
  %1064 = vmatprep.mubr.f32.mxu0 0.0
  %1065 = vmatmul.mubr.f32.gmra.mxu0 %v979
  %v1066 = vpop.f32.mrf.mxu0
  %v1067 = vadd.f32 0.0, %v1066
  %v1068 = vpop.f32.mrf.mxu0
  %1069 = vmatprep.mubr.f32.mxu0 0.0
  %1070 = vmatmul.mubr.f32.gmra.mxu0 %v982
  %v1071 = vpop.f32.mrf.mxu0
  %v1072 = vadd.f32 0.0, %v1071
  %v1073 = vpop.f32.mrf.mxu0
  %1074 = vmatprep.mubr.f32.mxu0 0.0
  %1075 = vmatmul.mubr.f32.gmra.mxu0 %v985
  %v1076 = vpop.f32.mrf.mxu0
  %v1077 = vadd.f32 0.0, %v1076
  %v1078 = vpop.f32.mrf.mxu0
  %1079 = vmatprep.mubr.f32.mxu0 0.0
  %1080 = vmatmul.mubr.f32.gmra.mxu0 %v988
  %v1081 = vpop.f32.mrf.mxu0
  %v1082 = vadd.f32 0.0, %v1081
  %v1083 = vpop.f32.mrf.mxu0
  %1084 = vdwg.mxu0
  %v1085 = vld [vmem:[%s27] sm:$0xff]
  %v1086 = vld [vmem:[%s27 + $0x8] sm:$0xff]
  %v1087 = vld [vmem:[%s27 + $0x10] sm:$0xff]
  %v1088 = vld [vmem:[%s27 + $0x18] sm:$0xff]
  %v1089 = vld [vmem:[%s27 + $0x20] sm:$0xff]
  %v1090 = vld [vmem:[%s27 + $0x28] sm:$0xff]
  %v1092 = vsel %vm276, %v1085, 0
  %v1095 = vsel %vm276, %v1086, 0
  %v1098 = vsel %vm276, %v1087, 0
  %v1101 = vsel %vm276, %v1088, 0
  %v1104 = vsel %vm276, %v1089, 0
  %v1107 = vsel %vm276, %v1090, 0
  %1109 = vmatprep.subr.mxu0 0.0
  %1110 = vmatpush1.msra.mxu0 0.0
  %1111 = vmatprep.subr.mxu0 0.0
  %1112 = vmatpush1.msra.mxu0 0.0
  %1113 = vmatprep.subr.mxu0 0.0
  %1114 = vmatpush1.msra.mxu0 0.0
  %1115 = vmatprep.subr.mxu0 0.0
  %1116 = vmatpush1.msra.mxu0 0.0
  %1117 = vmatprep.subr.mxu0 0.0
  %1118 = vmatpush1.msra.mxu0 0.0
  %1119 = vmatprep.subr.mxu0 0.0
  %1120 = vmatpush1.msra.mxu0 0.0
  %1121 = vmatprep.subr.mxu0 0.0
  %1122 = vmatpush1.msra.mxu0 0.0
  %1123 = vmatprep.subr.mxu0 0.0
  %1124 = vmatpush1.msra.mxu0 0.0
  %1125 = vmatprep.subr.mxu0 0.0
  %1126 = vmatpush1.msra.mxu0 0.0
  %1127 = vmatprep.subr.mxu0 0.0
  %1128 = vmatpush1.msra.mxu0 0.0
  %1129 = vmatprep.subr.mxu0 0.0
  %1130 = vmatpush1.msra.mxu0 %v1082
  %1131 = vmatprep.subr.mxu0 0.0
  %1132 = vmatpush1.msra.mxu0 %v1077
  %1133 = vmatprep.subr.mxu0 0.0
  %1134 = vmatpush1.msra.mxu0 %v1072
  %1135 = vmatprep.subr.mxu0 0.0
  %1136 = vmatpush1.msra.mxu0 %v1067
  %1137 = vmatprep.subr.mxu0 0.0
  %1138 = vmatpush1.msra.mxu0 %v1062
  %1139 = vmatprep.subr.mxu0 0.0
  %1140 = vmatpush1.msra.mxu0 %v1057
  %1141 = vmatprep.subr.mxu0 0.0
  %1142 = vmatpush2.msra.mxu0 0.0
  %1143 = vmatprep.subr.mxu0 0.0
  %1144 = vmatpush2.msra.mxu0 0.0
  %1145 = vmatprep.subr.mxu0 0.0
  %1146 = vmatpush2.msra.mxu0 0.0
  %1147 = vmatprep.subr.mxu0 0.0
  %1148 = vmatpush2.msra.mxu0 0.0
  %1149 = vmatprep.subr.mxu0 0.0
  %1150 = vmatpush2.msra.mxu0 0.0
  %1151 = vmatprep.subr.mxu0 0.0
  %1152 = vmatpush2.msra.mxu0 0.0
  %1153 = vmatprep.subr.mxu0 0.0
  %1154 = vmatpush2.msra.mxu0 0.0
  %1155 = vmatprep.subr.mxu0 0.0
  %1156 = vmatpush2.msra.mxu0 0.0
  %1157 = vmatprep.subr.mxu0 0.0
  %1158 = vmatpush2.msra.mxu0 0.0
  %1159 = vmatprep.subr.mxu0 0.0
  %1160 = vmatpush2.msra.mxu0 0.0
  %1161 = vmatprep.subr.mxu0 0.0
  %1162 = vmatpush2.msra.mxu0 0.0
  %1163 = vmatprep.subr.mxu0 0.0
  %1164 = vmatpush2.msra.mxu0 0.0
  %1165 = vmatprep.subr.mxu0 0.0
  %1166 = vmatpush2.msra.mxu0 0.0
  %1167 = vmatprep.subr.mxu0 0.0
  %1168 = vmatpush2.msra.mxu0 0.0
  %1169 = vmatprep.subr.mxu0 0.0
  %1170 = vmatpush2.msra.mxu0 0.0
  %1171 = vmatprep.subr.mxu0 0.0
  %1172 = vmatpush2.msra.mxu0 0.0
  %1173 = vmatprep.mubr.f32.mxu0 0.0
  %1174 = vmatmul.mubr.f32.gmra.mxu0 %v1092
  %v1175 = vpop.f32.mrf.mxu0
  %v1176 = vadd.f32 0.0, %v1175
  %v1177 = vpop.f32.mrf.mxu0
  %1178 = vmatprep.mubr.f32.mxu0 0.0
  %1179 = vmatmul.mubr.f32.gmra.mxu0 %v1095
  %v1180 = vpop.f32.mrf.mxu0
  %v1181 = vadd.f32 0.0, %v1180
  %v1182 = vpop.f32.mrf.mxu0
  %1183 = vmatprep.mubr.f32.mxu0 0.0
  %1184 = vmatmul.mubr.f32.gmra.mxu0 %v1098
  %v1185 = vpop.f32.mrf.mxu0
  %v1186 = vadd.f32 0.0, %v1185
  %v1187 = vpop.f32.mrf.mxu0
  %1188 = vmatprep.mubr.f32.mxu0 0.0
  %1189 = vmatmul.mubr.f32.gmra.mxu0 %v1101
  %v1190 = vpop.f32.mrf.mxu0
  %v1191 = vadd.f32 0.0, %v1190
  %v1192 = vpop.f32.mrf.mxu0
  %1193 = vmatprep.mubr.f32.mxu0 0.0
  %1194 = vmatmul.mubr.f32.gmra.mxu0 %v1104
  %v1195 = vpop.f32.mrf.mxu0
  %v1196 = vadd.f32 0.0, %v1195
  %v1197 = vpop.f32.mrf.mxu0
  %1198 = vmatprep.mubr.f32.mxu0 0.0
  %1199 = vmatmul.mubr.f32.gmra.mxu0 %v1107
  %v1200 = vpop.f32.mrf.mxu0
  %v1201 = vadd.f32 0.0, %v1200
  %v1202 = vpop.f32.mrf.mxu0
  %1203 = vdwg.mxu0
  %v1204 = vld [vmem:[%s31] sm:$0xff]
  %v1205 = vld [vmem:[%s31 + $0x8] sm:$0xff]
  %v1206 = vld [vmem:[%s31 + $0x10] sm:$0xff]
  %v1207 = vld [vmem:[%s31 + $0x18] sm:$0xff]
  %v1208 = vld [vmem:[%s31 + $0x20] sm:$0xff]
  %v1209 = vld [vmem:[%s31 + $0x28] sm:$0xff]
  %v1210 = vmul.f32 %v1176, %v1204
  %v1211 = vmul.f32 %v1181, %v1205
  %v1212 = vmul.f32 %v1186, %v1206
  %v1213 = vmul.f32 %v1191, %v1207
  %v1214 = vmul.f32 %v1196, %v1208
  %v1215 = vmul.f32 %v1201, %v1209
  %v1216 = vld [vmem:[%s33] sm:$0xff]
  %v1217 = vld [vmem:[%s33 + $0x8] sm:$0xff]
  %v1218 = vld [vmem:[%s33 + $0x10] sm:$0xff]
  %v1219 = vld [vmem:[%s33 + $0x18] sm:$0xff]
  %v1220 = vld [vmem:[%s33 + $0x20] sm:$0xff]
  %v1221 = vld [vmem:[%s33 + $0x28] sm:$0xff]
  %v1222 = vadd.f32 %v1210, %v1216
  %v1223 = vadd.f32 %v1211, %v1217
  %v1224 = vadd.f32 %v1212, %v1218
  %v1225 = vadd.f32 %v1213, %v1219
  %v1226 = vadd.f32 %v1214, %v1220
  %v1227 = vadd.f32 %v1215, %v1221
  %v1228 = vtanh.pop %v1222
  %v1229 = vtanh.pop %v1223
  %v1230 = vtanh.pop %v1224
  %v1231 = vtanh.pop %v1225
  %v1232 = vtanh.pop %v1226
  %v1233 = vtanh.pop %v1227
  %v1234 = vadd.f32 %v1228, %v414
  %v1235 = vadd.f32 %v1229, %v415
  %v1236 = vadd.f32 %v1230, %v416
  %v1237 = vadd.f32 %v1231, %v417
  %v1238 = vadd.f32 %v1232, %v418
  %v1239 = vadd.f32 %v1233, %v419
  %v1240 = vld [vmem:[%s51] sm:$0xff]
  %v1241 = vld [vmem:[%s51 + $0x8] sm:$0xff]
  %v1242 = vld [vmem:[%s51 + $0x10] sm:$0xff]
  %v1243 = vld [vmem:[%s51 + $0x18] sm:$0xff]
  %v1244 = vld [vmem:[%s51 + $0x20] sm:$0xff]
  %v1245 = vld [vmem:[%s51 + $0x28] sm:$0xff]
  %v1246 = vld [vmem:[%s51 + $0x30] sm:$0xff]
  %v1247 = vld [vmem:[%s51 + $0x38] sm:$0xff]
  %v1248 = vld [vmem:[%s53] sm:$0xff]
  %v1249 = vld [vmem:[%s53 + $0x8] sm:$0xff]
  %v1250 = vld [vmem:[%s53 + $0x10] sm:$0xff]
  %v1251 = vld [vmem:[%s53 + $0x18] sm:$0xff]
  %v1252 = vld [vmem:[%s53 + $0x20] sm:$0xff]
  %v1253 = vld [vmem:[%s53 + $0x28] sm:$0xff]
  %v1254 = vld [vmem:[%s53 + $0x30] sm:$0xff]
  %v1255 = vld [vmem:[%s53 + $0x38] sm:$0xff]
  %v1257 = vsel %vm701, %v1234, 0
  %v1260 = vsel %vm701, %v1235, 0
  %v1263 = vsel %vm701, %v1236, 0
  %v1266 = vsel %vm701, %v1237, 0
  %v1269 = vsel %vm701, %v1238, 0
  %v1272 = vsel %vm701, %v1239, 0
  %1274 = vmatprep.subr.mxu0 0.0
  %1275 = vmatpush1.msra.mxu0 0.0
  %1276 = vmatprep.subr.mxu0 0.0
  %1277 = vmatpush1.msra.mxu0 0.0
  %1278 = vmatprep.subr.mxu0 0.0
  %1279 = vmatpush1.msra.mxu0 0.0
  %1280 = vmatprep.subr.mxu0 0.0
  %1281 = vmatpush1.msra.mxu0 0.0
  %1282 = vmatprep.subr.mxu0 0.0
  %1283 = vmatpush1.msra.mxu0 0.0
  %1284 = vmatprep.subr.mxu0 0.0
  %1285 = vmatpush1.msra.mxu0 0.0
  %1286 = vmatprep.subr.mxu0 0.0
  %1287 = vmatpush1.msra.mxu0 0.0
  %1288 = vmatprep.subr.mxu0 0.0
  %1289 = vmatpush1.msra.mxu0 0.0
  %1290 = vmatprep.subr.mxu0 0.0
  %1291 = vmatpush1.msra.mxu0 %v1255
  %1292 = vmatprep.subr.mxu0 0.0
  %1293 = vmatpush1.msra.mxu0 %v1254
  %1294 = vmatprep.subr.mxu0 0.0
  %1295 = vmatpush1.msra.mxu0 %v1253
  %1296 = vmatprep.subr.mxu0 0.0
  %1297 = vmatpush1.msra.mxu0 %v1252
  %1298 = vmatprep.subr.mxu0 0.0
  %1299 = vmatpush1.msra.mxu0 %v1251
  %1300 = vmatprep.subr.mxu0 0.0
  %1301 = vmatpush1.msra.mxu0 %v1250
  %1302 = vmatprep.subr.mxu0 0.0
  %1303 = vmatpush1.msra.mxu0 %v1249
  %1304 = vmatprep.subr.mxu0 0.0
  %1305 = vmatpush1.msra.mxu0 %v1248
  %1306 = vmatprep.subr.mxu0 0.0
  %1307 = vmatpush2.msra.mxu0 0.0
  %1308 = vmatprep.subr.mxu0 0.0
  %1309 = vmatpush2.msra.mxu0 0.0
  %1310 = vmatprep.subr.mxu0 0.0
  %1311 = vmatpush2.msra.mxu0 0.0
  %1312 = vmatprep.subr.mxu0 0.0
  %1313 = vmatpush2.msra.mxu0 0.0
  %1314 = vmatprep.subr.mxu0 0.0
  %1315 = vmatpush2.msra.mxu0 0.0
  %1316 = vmatprep.subr.mxu0 0.0
  %1317 = vmatpush2.msra.mxu0 0.0
  %1318 = vmatprep.subr.mxu0 0.0
  %1319 = vmatpush2.msra.mxu0 0.0
  %1320 = vmatprep.subr.mxu0 0.0
  %1321 = vmatpush2.msra.mxu0 0.0
  %1322 = vmatprep.subr.mxu0 0.0
  %1323 = vmatpush2.msra.mxu0 0.0
  %1324 = vmatprep.subr.mxu0 0.0
  %1325 = vmatpush2.msra.mxu0 0.0
  %1326 = vmatprep.subr.mxu0 0.0
  %1327 = vmatpush2.msra.mxu0 0.0
  %1328 = vmatprep.subr.mxu0 0.0
  %1329 = vmatpush2.msra.mxu0 0.0
  %1330 = vmatprep.subr.mxu0 0.0
  %1331 = vmatpush2.msra.mxu0 0.0
  %1332 = vmatprep.subr.mxu0 0.0
  %1333 = vmatpush2.msra.mxu0 0.0
  %1334 = vmatprep.subr.mxu0 0.0
  %1335 = vmatpush2.msra.mxu0 0.0
  %1336 = vmatprep.subr.mxu0 0.0
  %1337 = vmatpush2.msra.mxu0 0.0
  %1338 = vmatprep.mubr.f32.mxu0 0.0
  %1339 = vmatmul.mubr.f32.gmra.mxu0 %v1257
  %v1340 = vpop.f32.mrf.mxu0
  %v1341 = vadd.f32 0.0, %v1340
  %v1342 = vpop.f32.mrf.mxu0
  %1343 = vmatprep.mubr.f32.mxu0 0.0
  %1344 = vmatmul.mubr.f32.gmra.mxu0 %v1260
  %v1345 = vpop.f32.mrf.mxu0
  %v1346 = vadd.f32 0.0, %v1345
  %v1347 = vpop.f32.mrf.mxu0
  %1348 = vmatprep.mubr.f32.mxu0 0.0
  %1349 = vmatmul.mubr.f32.gmra.mxu0 %v1263
  %v1350 = vpop.f32.mrf.mxu0
  %v1351 = vadd.f32 0.0, %v1350
  %v1352 = vpop.f32.mrf.mxu0
  %1353 = vmatprep.mubr.f32.mxu0 0.0
  %1354 = vmatmul.mubr.f32.gmra.mxu0 %v1266
  %v1355 = vpop.f32.mrf.mxu0
  %v1356 = vadd.f32 0.0, %v1355
  %v1357 = vpop.f32.mrf.mxu0
  %1358 = vmatprep.mubr.f32.mxu0 0.0
  %1359 = vmatmul.mubr.f32.gmra.mxu0 %v1269
  %v1360 = vpop.f32.mrf.mxu0
  %v1361 = vadd.f32 0.0, %v1360
  %v1362 = vpop.f32.mrf.mxu0
  %1363 = vmatprep.mubr.f32.mxu0 0.0
  %1364 = vmatmul.mubr.f32.gmra.mxu0 %v1272
  %v1365 = vpop.f32.mrf.mxu0
  %v1366 = vadd.f32 0.0, %v1365
  %v1367 = vpop.f32.mrf.mxu0
  %1368 = vdwg.mxu0
  %v1370 = vsel %vm701, %v687, 0
  %v1373 = vsel %vm701, %v688, 0
  %v1376 = vsel %vm701, %v689, 0
  %v1379 = vsel %vm701, %v690, 0
  %v1382 = vsel %vm701, %v691, 0
  %v1385 = vsel %vm701, %v692, 0
  %1387 = vmatprep.subr.mxu0 0.0
  %1388 = vmatpush1.msra.mxu0 0.0
  %1389 = vmatprep.subr.mxu0 0.0
  %1390 = vmatpush1.msra.mxu0 0.0
  %1391 = vmatprep.subr.mxu0 0.0
  %1392 = vmatpush1.msra.mxu0 0.0
  %1393 = vmatprep.subr.mxu0 0.0
  %1394 = vmatpush1.msra.mxu0 0.0
  %1395 = vmatprep.subr.mxu0 0.0
  %1396 = vmatpush1.msra.mxu0 0.0
  %1397 = vmatprep.subr.mxu0 0.0
  %1398 = vmatpush1.msra.mxu0 0.0
  %1399 = vmatprep.subr.mxu0 0.0
  %1400 = vmatpush1.msra.mxu0 0.0
  %1401 = vmatprep.subr.mxu0 0.0
  %1402 = vmatpush1.msra.mxu0 0.0
  %1403 = vmatprep.subr.mxu0 0.0
  %1404 = vmatpush1.msra.mxu0 %v1247
  %1405 = vmatprep.subr.mxu0 0.0
  %1406 = vmatpush1.msra.mxu0 %v1246
  %1407 = vmatprep.subr.mxu0 0.0
  %1408 = vmatpush1.msra.mxu0 %v1245
  %1409 = vmatprep.subr.mxu0 0.0
  %1410 = vmatpush1.msra.mxu0 %v1244
  %1411 = vmatprep.subr.mxu0 0.0
  %1412 = vmatpush1.msra.mxu0 %v1243
  %1413 = vmatprep.subr.mxu0 0.0
  %1414 = vmatpush1.msra.mxu0 %v1242
  %1415 = vmatprep.subr.mxu0 0.0
  %1416 = vmatpush1.msra.mxu0 %v1241
  %1417 = vmatprep.subr.mxu0 0.0
  %1418 = vmatpush1.msra.mxu0 %v1240
  %1419 = vmatprep.subr.mxu0 0.0
  %1420 = vmatpush2.msra.mxu0 0.0
  %1421 = vmatprep.subr.mxu0 0.0
  %1422 = vmatpush2.msra.mxu0 0.0
  %1423 = vmatprep.subr.mxu0 0.0
  %1424 = vmatpush2.msra.mxu0 0.0
  %1425 = vmatprep.subr.mxu0 0.0
  %1426 = vmatpush2.msra.mxu0 0.0
  %1427 = vmatprep.subr.mxu0 0.0
  %1428 = vmatpush2.msra.mxu0 0.0
  %1429 = vmatprep.subr.mxu0 0.0
  %1430 = vmatpush2.msra.mxu0 0.0
  %1431 = vmatprep.subr.mxu0 0.0
  %1432 = vmatpush2.msra.mxu0 0.0
  %1433 = vmatprep.subr.mxu0 0.0
  %1434 = vmatpush2.msra.mxu0 0.0
  %1435 = vmatprep.subr.mxu0 0.0
  %1436 = vmatpush2.msra.mxu0 0.0
  %1437 = vmatprep.subr.mxu0 0.0
  %1438 = vmatpush2.msra.mxu0 0.0
  %1439 = vmatprep.subr.mxu0 0.0
  %1440 = vmatpush2.msra.mxu0 0.0
  %1441 = vmatprep.subr.mxu0 0.0
  %1442 = vmatpush2.msra.mxu0 0.0
  %1443 = vmatprep.subr.mxu0 0.0
  %1444 = vmatpush2.msra.mxu0 0.0
  %1445 = vmatprep.subr.mxu0 0.0
  %1446 = vmatpush2.msra.mxu0 0.0
  %1447 = vmatprep.subr.mxu0 0.0
  %1448 = vmatpush2.msra.mxu0 0.0
  %1449 = vmatprep.subr.mxu0 0.0
  %1450 = vmatpush2.msra.mxu0 0.0
  %1451 = vmatprep.mubr.f32.mxu0 0.0
  %1452 = vmatmul.mubr.f32.gmra.mxu0 %v1370
  %v1453 = vpop.f32.mrf.mxu0
  %v1454 = vadd.f32 %v1341, %v1453
  %v1455 = vpop.f32.mrf.mxu0
  %1456 = vmatprep.mubr.f32.mxu0 0.0
  %1457 = vmatmul.mubr.f32.gmra.mxu0 %v1373
  %v1458 = vpop.f32.mrf.mxu0
  %v1459 = vadd.f32 %v1346, %v1458
  %v1460 = vpop.f32.mrf.mxu0
  %1461 = vmatprep.mubr.f32.mxu0 0.0
  %1462 = vmatmul.mubr.f32.gmra.mxu0 %v1376
  %v1463 = vpop.f32.mrf.mxu0
  %v1464 = vadd.f32 %v1351, %v1463
  %v1465 = vpop.f32.mrf.mxu0
  %1466 = vmatprep.mubr.f32.mxu0 0.0
  %1467 = vmatmul.mubr.f32.gmra.mxu0 %v1379
  %v1468 = vpop.f32.mrf.mxu0
  %v1469 = vadd.f32 %v1356, %v1468
  %v1470 = vpop.f32.mrf.mxu0
  %1471 = vmatprep.mubr.f32.mxu0 0.0
  %1472 = vmatmul.mubr.f32.gmra.mxu0 %v1382
  %v1473 = vpop.f32.mrf.mxu0
  %v1474 = vadd.f32 %v1361, %v1473
  %v1475 = vpop.f32.mrf.mxu0
  %1476 = vmatprep.mubr.f32.mxu0 0.0
  %1477 = vmatmul.mubr.f32.gmra.mxu0 %v1385
  %v1478 = vpop.f32.mrf.mxu0
  %v1479 = vadd.f32 %v1366, %v1478
  %v1480 = vpop.f32.mrf.mxu0
  %1481 = vdwg.mxu0
  %v1482 = vld [vmem:[%s55] sm:$0xff]
  %v1483 = vld [vmem:[%s55 + $0x8] sm:$0xff]
  %v1484 = vld [vmem:[%s55 + $0x10] sm:$0xff]
  %v1485 = vld [vmem:[%s55 + $0x18] sm:$0xff]
  %v1486 = vld [vmem:[%s55 + $0x20] sm:$0xff]
  %v1487 = vld [vmem:[%s55 + $0x28] sm:$0xff]
  %v1488 = vmul.f32 %v1454, %v1482
  %v1489 = vmul.f32 %v1459, %v1483
  %v1490 = vmul.f32 %v1464, %v1484
  %v1491 = vmul.f32 %v1469, %v1485
  %v1492 = vmul.f32 %v1474, %v1486
  %v1493 = vmul.f32 %v1479, %v1487
  %v1494 = vld [vmem:[%s57] sm:$0xff]
  %v1495 = vld [vmem:[%s57 + $0x8] sm:$0xff]
  %v1496 = vld [vmem:[%s57 + $0x10] sm:$0xff]
  %v1497 = vld [vmem:[%s57 + $0x18] sm:$0xff]
  %v1498 = vld [vmem:[%s57 + $0x20] sm:$0xff]
  %v1499 = vld [vmem:[%s57 + $0x28] sm:$0xff]
  %v1500 = vadd.f32 %v1488, %v1494
  %v1501 = vadd.f32 %v1489, %v1495
  %v1502 = vadd.f32 %v1490, %v1496
  %v1503 = vadd.f32 %v1491, %v1497
  %v1504 = vadd.f32 %v1492, %v1498
  %v1505 = vadd.f32 %v1493, %v1499
  %v1506 = vtanh.pop %v1500
  %v1507 = vtanh.pop %v1501
  %v1508 = vtanh.pop %v1502
  %v1509 = vtanh.pop %v1503
  %v1510 = vtanh.pop %v1504
  %v1511 = vtanh.pop %v1505
  %v1512 = vld [vmem:[%s37] sm:$0xff]
  %v1513 = vld [vmem:[%s37 + $0x8] sm:$0xff]
  %v1514 = vld [vmem:[%s37 + $0x10] sm:$0xff]
  %v1515 = vld [vmem:[%s37 + $0x18] sm:$0xff]
  %v1516 = vld [vmem:[%s37 + $0x20] sm:$0xff]
  %v1517 = vld [vmem:[%s37 + $0x28] sm:$0xff]
  %v1518 = vld [vmem:[%s37 + $0x30] sm:$0xff]
  %v1519 = vld [vmem:[%s37 + $0x38] sm:$0xff]
  %v1521 = vsel %vm701, %v1506, 0
  %v1524 = vsel %vm701, %v1507, 0
  %v1527 = vsel %vm701, %v1508, 0
  %v1530 = vsel %vm701, %v1509, 0
  %v1533 = vsel %vm701, %v1510, 0
  %v1536 = vsel %vm701, %v1511, 0
  %1538 = vmatprep.subr.mxu0 0.0
  %1539 = vmatpush1.msra.mxu0 0.0
  %1540 = vmatprep.subr.mxu0 0.0
  %1541 = vmatpush1.msra.mxu0 0.0
  %1542 = vmatprep.subr.mxu0 0.0
  %1543 = vmatpush1.msra.mxu0 0.0
  %1544 = vmatprep.subr.mxu0 0.0
  %1545 = vmatpush1.msra.mxu0 0.0
  %1546 = vmatprep.subr.mxu0 0.0
  %1547 = vmatpush1.msra.mxu0 0.0
  %1548 = vmatprep.subr.mxu0 0.0
  %1549 = vmatpush1.msra.mxu0 0.0
  %1550 = vmatprep.subr.mxu0 0.0
  %1551 = vmatpush1.msra.mxu0 0.0
  %1552 = vmatprep.subr.mxu0 0.0
  %1553 = vmatpush1.msra.mxu0 0.0
  %1554 = vmatprep.subr.mxu0 0.0
  %1555 = vmatpush1.msra.mxu0 %v1519
  %1556 = vmatprep.subr.mxu0 0.0
  %1557 = vmatpush1.msra.mxu0 %v1518
  %1558 = vmatprep.subr.mxu0 0.0
  %1559 = vmatpush1.msra.mxu0 %v1517
  %1560 = vmatprep.subr.mxu0 0.0
  %1561 = vmatpush1.msra.mxu0 %v1516
  %1562 = vmatprep.subr.mxu0 0.0
  %1563 = vmatpush1.msra.mxu0 %v1515
  %1564 = vmatprep.subr.mxu0 0.0
  %1565 = vmatpush1.msra.mxu0 %v1514
  %1566 = vmatprep.subr.mxu0 0.0
  %1567 = vmatpush1.msra.mxu0 %v1513
  %1568 = vmatprep.subr.mxu0 0.0
  %1569 = vmatpush1.msra.mxu0 %v1512
  %1570 = vmatprep.subr.mxu0 0.0
  %1571 = vmatpush2.msra.mxu0 0.0
  %1572 = vmatprep.subr.mxu0 0.0
  %1573 = vmatpush2.msra.mxu0 0.0
  %1574 = vmatprep.subr.mxu0 0.0
  %1575 = vmatpush2.msra.mxu0 0.0
  %1576 = vmatprep.subr.mxu0 0.0
  %1577 = vmatpush2.msra.mxu0 0.0
  %1578 = vmatprep.subr.mxu0 0.0
  %1579 = vmatpush2.msra.mxu0 0.0
  %1580 = vmatprep.subr.mxu0 0.0
  %1581 = vmatpush2.msra.mxu0 0.0
  %1582 = vmatprep.subr.mxu0 0.0
  %1583 = vmatpush2.msra.mxu0 0.0
  %1584 = vmatprep.subr.mxu0 0.0
  %1585 = vmatpush2.msra.mxu0 0.0
  %1586 = vmatprep.subr.mxu0 0.0
  %1587 = vmatpush2.msra.mxu0 0.0
  %1588 = vmatprep.subr.mxu0 0.0
  %1589 = vmatpush2.msra.mxu0 0.0
  %1590 = vmatprep.subr.mxu0 0.0
  %1591 = vmatpush2.msra.mxu0 0.0
  %1592 = vmatprep.subr.mxu0 0.0
  %1593 = vmatpush2.msra.mxu0 0.0
  %1594 = vmatprep.subr.mxu0 0.0
  %1595 = vmatpush2.msra.mxu0 0.0
  %1596 = vmatprep.subr.mxu0 0.0
  %1597 = vmatpush2.msra.mxu0 0.0
  %1598 = vmatprep.subr.mxu0 0.0
  %1599 = vmatpush2.msra.mxu0 0.0
  %1600 = vmatprep.subr.mxu0 0.0
  %1601 = vmatpush2.msra.mxu0 0.0
  %1602 = vmatprep.mubr.f32.mxu0 0.0
  %1603 = vmatmul.mubr.f32.gmra.mxu0 %v1521
  %v1604 = vpop.f32.mrf.mxu0
  %v1605 = vadd.f32 0.0, %v1604
  %v1606 = vpop.f32.mrf.mxu0
  %1607 = vmatprep.mubr.f32.mxu0 0.0
  %1608 = vmatmul.mubr.f32.gmra.mxu0 %v1524
  %v1609 = vpop.f32.mrf.mxu0
  %v1610 = vadd.f32 0.0, %v1609
  %v1611 = vpop.f32.mrf.mxu0
  %1612 = vmatprep.mubr.f32.mxu0 0.0
  %1613 = vmatmul.mubr.f32.gmra.mxu0 %v1527
  %v1614 = vpop.f32.mrf.mxu0
  %v1615 = vadd.f32 0.0, %v1614
  %v1616 = vpop.f32.mrf.mxu0
  %1617 = vmatprep.mubr.f32.mxu0 0.0
  %1618 = vmatmul.mubr.f32.gmra.mxu0 %v1530
  %v1619 = vpop.f32.mrf.mxu0
  %v1620 = vadd.f32 0.0, %v1619
  %v1621 = vpop.f32.mrf.mxu0
  %1622 = vmatprep.mubr.f32.mxu0 0.0
  %1623 = vmatmul.mubr.f32.gmra.mxu0 %v1533
  %v1624 = vpop.f32.mrf.mxu0
  %v1625 = vadd.f32 0.0, %v1624
  %v1626 = vpop.f32.mrf.mxu0
  %1627 = vmatprep.mubr.f32.mxu0 0.0
  %1628 = vmatmul.mubr.f32.gmra.mxu0 %v1536
  %v1629 = vpop.f32.mrf.mxu0
  %v1630 = vadd.f32 0.0, %v1629
  %v1631 = vpop.f32.mrf.mxu0
  %1632 = vdwg.mxu0
  %v1633 = vld [vmem:[%s35] sm:$0xff]
  %v1634 = vld [vmem:[%s35 + $0x8] sm:$0xff]
  %v1635 = vld [vmem:[%s35 + $0x10] sm:$0xff]
  %v1636 = vld [vmem:[%s35 + $0x18] sm:$0xff]
  %v1637 = vld [vmem:[%s35 + $0x20] sm:$0xff]
  %v1638 = vld [vmem:[%s35 + $0x28] sm:$0xff]
  %v1640 = vsel %vm276, %v1633, 0
  %v1643 = vsel %vm276, %v1634, 0
  %v1646 = vsel %vm276, %v1635, 0
  %v1649 = vsel %vm276, %v1636, 0
  %v1652 = vsel %vm276, %v1637, 0
  %v1655 = vsel %vm276, %v1638, 0
  %1657 = vmatprep.subr.mxu0 0.0
  %1658 = vmatpush1.msra.mxu0 0.0
  %1659 = vmatprep.subr.mxu0 0.0
  %1660 = vmatpush1.msra.mxu0 0.0
  %1661 = vmatprep.subr.mxu0 0.0
  %1662 = vmatpush1.msra.mxu0 0.0
  %1663 = vmatprep.subr.mxu0 0.0
  %1664 = vmatpush1.msra.mxu0 0.0
  %1665 = vmatprep.subr.mxu0 0.0
  %1666 = vmatpush1.msra.mxu0 0.0
  %1667 = vmatprep.subr.mxu0 0.0
  %1668 = vmatpush1.msra.mxu0 0.0
  %1669 = vmatprep.subr.mxu0 0.0
  %1670 = vmatpush1.msra.mxu0 0.0
  %1671 = vmatprep.subr.mxu0 0.0
  %1672 = vmatpush1.msra.mxu0 0.0
  %1673 = vmatprep.subr.mxu0 0.0
  %1674 = vmatpush1.msra.mxu0 0.0
  %1675 = vmatprep.subr.mxu0 0.0
  %1676 = vmatpush1.msra.mxu0 0.0
  %1677 = vmatprep.subr.mxu0 0.0
  %1678 = vmatpush1.msra.mxu0 %v1630
  %1679 = vmatprep.subr.mxu0 0.0
  %1680 = vmatpush1.msra.mxu0 %v1625
  %1681 = vmatprep.subr.mxu0 0.0
  %1682 = vmatpush1.msra.mxu0 %v1620
  %1683 = vmatprep.subr.mxu0 0.0
  %1684 = vmatpush1.msra.mxu0 %v1615
  %1685 = vmatprep.subr.mxu0 0.0
  %1686 = vmatpush1.msra.mxu0 %v1610
  %1687 = vmatprep.subr.mxu0 0.0
  %1688 = vmatpush1.msra.mxu0 %v1605
  %1689 = vmatprep.subr.mxu0 0.0
  %1690 = vmatpush2.msra.mxu0 0.0
  %1691 = vmatprep.subr.mxu0 0.0
  %1692 = vmatpush2.msra.mxu0 0.0
  %1693 = vmatprep.subr.mxu0 0.0
  %1694 = vmatpush2.msra.mxu0 0.0
  %1695 = vmatprep.subr.mxu0 0.0
  %1696 = vmatpush2.msra.mxu0 0.0
  %1697 = vmatprep.subr.mxu0 0.0
  %1698 = vmatpush2.msra.mxu0 0.0
  %1699 = vmatprep.subr.mxu0 0.0
  %1700 = vmatpush2.msra.mxu0 0.0
  %1701 = vmatprep.subr.mxu0 0.0
  %1702 = vmatpush2.msra.mxu0 0.0
  %1703 = vmatprep.subr.mxu0 0.0
  %1704 = vmatpush2.msra.mxu0 0.0
  %1705 = vmatprep.subr.mxu0 0.0
  %1706 = vmatpush2.msra.mxu0 0.0
  %1707 = vmatprep.subr.mxu0 0.0
  %1708 = vmatpush2.msra.mxu0 0.0
  %1709 = vmatprep.subr.mxu0 0.0
  %1710 = vmatpush2.msra.mxu0 0.0
  %1711 = vmatprep.subr.mxu0 0.0
  %1712 = vmatpush2.msra.mxu0 0.0
  %1713 = vmatprep.subr.mxu0 0.0
  %1714 = vmatpush2.msra.mxu0 0.0
  %1715 = vmatprep.subr.mxu0 0.0
  %1716 = vmatpush2.msra.mxu0 0.0
  %1717 = vmatprep.subr.mxu0 0.0
  %1718 = vmatpush2.msra.mxu0 0.0
  %1719 = vmatprep.subr.mxu0 0.0
  %1720 = vmatpush2.msra.mxu0 0.0
  %1721 = vmatprep.mubr.f32.mxu0 0.0
  %1722 = vmatmul.mubr.f32.gmra.mxu0 %v1640
  %v1723 = vpop.f32.mrf.mxu0
  %v1724 = vadd.f32 0.0, %v1723
  %v1725 = vpop.f32.mrf.mxu0
  %1726 = vmatprep.mubr.f32.mxu0 0.0
  %1727 = vmatmul.mubr.f32.gmra.mxu0 %v1643
  %v1728 = vpop.f32.mrf.mxu0
  %v1729 = vadd.f32 0.0, %v1728
  %v1730 = vpop.f32.mrf.mxu0
  %1731 = vmatprep.mubr.f32.mxu0 0.0
  %1732 = vmatmul.mubr.f32.gmra.mxu0 %v1646
  %v1733 = vpop.f32.mrf.mxu0
  %v1734 = vadd.f32 0.0, %v1733
  %v1735 = vpop.f32.mrf.mxu0
  %1736 = vmatprep.mubr.f32.mxu0 0.0
  %1737 = vmatmul.mubr.f32.gmra.mxu0 %v1649
  %v1738 = vpop.f32.mrf.mxu0
  %v1739 = vadd.f32 0.0, %v1738
  %v1740 = vpop.f32.mrf.mxu0
  %1741 = vmatprep.mubr.f32.mxu0 0.0
  %1742 = vmatmul.mubr.f32.gmra.mxu0 %v1652
  %v1743 = vpop.f32.mrf.mxu0
  %v1744 = vadd.f32 0.0, %v1743
  %v1745 = vpop.f32.mrf.mxu0
  %1746 = vmatprep.mubr.f32.mxu0 0.0
  %1747 = vmatmul.mubr.f32.gmra.mxu0 %v1655
  %v1748 = vpop.f32.mrf.mxu0
  %v1749 = vadd.f32 0.0, %v1748
  %v1750 = vpop.f32.mrf.mxu0
  %1751 = vdwg.mxu0
  %v1752 = vld [vmem:[%s39] sm:$0xff]
  %v1753 = vld [vmem:[%s39 + $0x8] sm:$0xff]
  %v1754 = vld [vmem:[%s39 + $0x10] sm:$0xff]
  %v1755 = vld [vmem:[%s39 + $0x18] sm:$0xff]
  %v1756 = vld [vmem:[%s39 + $0x20] sm:$0xff]
  %v1757 = vld [vmem:[%s39 + $0x28] sm:$0xff]
  %v1758 = vmul.f32 %v1724, %v1752
  %v1759 = vmul.f32 %v1729, %v1753
  %v1760 = vmul.f32 %v1734, %v1754
  %v1761 = vmul.f32 %v1739, %v1755
  %v1762 = vmul.f32 %v1744, %v1756
  %v1763 = vmul.f32 %v1749, %v1757
  %v1764 = vld [vmem:[%s41] sm:$0xff]
  %v1765 = vld [vmem:[%s41 + $0x8] sm:$0xff]
  %v1766 = vld [vmem:[%s41 + $0x10] sm:$0xff]
  %v1767 = vld [vmem:[%s41 + $0x18] sm:$0xff]
  %v1768 = vld [vmem:[%s41 + $0x20] sm:$0xff]
  %v1769 = vld [vmem:[%s41 + $0x28] sm:$0xff]
  %v1770 = vadd.f32 %v1758, %v1764
  %v1771 = vadd.f32 %v1759, %v1765
  %v1772 = vadd.f32 %v1760, %v1766
  %v1773 = vadd.f32 %v1761, %v1767
  %v1774 = vadd.f32 %v1762, %v1768
  %v1775 = vadd.f32 %v1763, %v1769
  %v1776 = vtanh.pop %v1770
  %v1777 = vtanh.pop %v1771
  %v1778 = vtanh.pop %v1772
  %v1779 = vtanh.pop %v1773
  %v1780 = vtanh.pop %v1774
  %v1781 = vtanh.pop %v1775
  %v1782 = vld [vmem:[%s45] sm:$0xff]
  %v1783 = vld [vmem:[%s45 + $0x8] sm:$0xff]
  %v1784 = vld [vmem:[%s45 + $0x10] sm:$0xff]
  %v1785 = vld [vmem:[%s45 + $0x18] sm:$0xff]
  %v1786 = vld [vmem:[%s45 + $0x20] sm:$0xff]
  %v1787 = vld [vmem:[%s45 + $0x28] sm:$0xff]
  %v1788 = vld [vmem:[%s45 + $0x30] sm:$0xff]
  %v1789 = vld [vmem:[%s45 + $0x38] sm:$0xff]
  %v1791 = vsel %vm701, %v1776, 0
  %v1794 = vsel %vm701, %v1777, 0
  %v1797 = vsel %vm701, %v1778, 0
  %v1800 = vsel %vm701, %v1779, 0
  %v1803 = vsel %vm701, %v1780, 0
  %v1806 = vsel %vm701, %v1781, 0
  %1808 = vmatprep.subr.mxu0 0.0
  %1809 = vmatpush1.msra.mxu0 0.0
  %1810 = vmatprep.subr.mxu0 0.0
  %1811 = vmatpush1.msra.mxu0 0.0
  %1812 = vmatprep.subr.mxu0 0.0
  %1813 = vmatpush1.msra.mxu0 0.0
  %1814 = vmatprep.subr.mxu0 0.0
  %1815 = vmatpush1.msra.mxu0 0.0
  %1816 = vmatprep.subr.mxu0 0.0
  %1817 = vmatpush1.msra.mxu0 0.0
  %1818 = vmatprep.subr.mxu0 0.0
  %1819 = vmatpush1.msra.mxu0 0.0
  %1820 = vmatprep.subr.mxu0 0.0
  %1821 = vmatpush1.msra.mxu0 0.0
  %1822 = vmatprep.subr.mxu0 0.0
  %1823 = vmatpush1.msra.mxu0 0.0
  %1824 = vmatprep.subr.mxu0 0.0
  %1825 = vmatpush1.msra.mxu0 %v1789
  %1826 = vmatprep.subr.mxu0 0.0
  %1827 = vmatpush1.msra.mxu0 %v1788
  %1828 = vmatprep.subr.mxu0 0.0
  %1829 = vmatpush1.msra.mxu0 %v1787
  %1830 = vmatprep.subr.mxu0 0.0
  %1831 = vmatpush1.msra.mxu0 %v1786
  %1832 = vmatprep.subr.mxu0 0.0
  %1833 = vmatpush1.msra.mxu0 %v1785
  %1834 = vmatprep.subr.mxu0 0.0
  %1835 = vmatpush1.msra.mxu0 %v1784
  %1836 = vmatprep.subr.mxu0 0.0
  %1837 = vmatpush1.msra.mxu0 %v1783
  %1838 = vmatprep.subr.mxu0 0.0
  %1839 = vmatpush1.msra.mxu0 %v1782
  %1840 = vmatprep.subr.mxu0 0.0
  %1841 = vmatpush2.msra.mxu0 0.0
  %1842 = vmatprep.subr.mxu0 0.0
  %1843 = vmatpush2.msra.mxu0 0.0
  %1844 = vmatprep.subr.mxu0 0.0
  %1845 = vmatpush2.msra.mxu0 0.0
  %1846 = vmatprep.subr.mxu0 0.0
  %1847 = vmatpush2.msra.mxu0 0.0
  %1848 = vmatprep.subr.mxu0 0.0
  %1849 = vmatpush2.msra.mxu0 0.0
  %1850 = vmatprep.subr.mxu0 0.0
  %1851 = vmatpush2.msra.mxu0 0.0
  %1852 = vmatprep.subr.mxu0 0.0
  %1853 = vmatpush2.msra.mxu0 0.0
  %1854 = vmatprep.subr.mxu0 0.0
  %1855 = vmatpush2.msra.mxu0 0.0
  %1856 = vmatprep.subr.mxu0 0.0
  %1857 = vmatpush2.msra.mxu0 0.0
  %1858 = vmatprep.subr.mxu0 0.0
  %1859 = vmatpush2.msra.mxu0 0.0
  %1860 = vmatprep.subr.mxu0 0.0
  %1861 = vmatpush2.msra.mxu0 0.0
  %1862 = vmatprep.subr.mxu0 0.0
  %1863 = vmatpush2.msra.mxu0 0.0
  %1864 = vmatprep.subr.mxu0 0.0
  %1865 = vmatpush2.msra.mxu0 0.0
  %1866 = vmatprep.subr.mxu0 0.0
  %1867 = vmatpush2.msra.mxu0 0.0
  %1868 = vmatprep.subr.mxu0 0.0
  %1869 = vmatpush2.msra.mxu0 0.0
  %1870 = vmatprep.subr.mxu0 0.0
  %1871 = vmatpush2.msra.mxu0 0.0
  %1872 = vmatprep.mubr.f32.mxu0 0.0
  %1873 = vmatmul.mubr.f32.gmra.mxu0 %v1791
  %v1874 = vpop.f32.mrf.mxu0
  %v1875 = vadd.f32 0.0, %v1874
  %v1876 = vpop.f32.mrf.mxu0
  %1877 = vmatprep.mubr.f32.mxu0 0.0
  %1878 = vmatmul.mubr.f32.gmra.mxu0 %v1794
  %v1879 = vpop.f32.mrf.mxu0
  %v1880 = vadd.f32 0.0, %v1879
  %v1881 = vpop.f32.mrf.mxu0
  %1882 = vmatprep.mubr.f32.mxu0 0.0
  %1883 = vmatmul.mubr.f32.gmra.mxu0 %v1797
  %v1884 = vpop.f32.mrf.mxu0
  %v1885 = vadd.f32 0.0, %v1884
  %v1886 = vpop.f32.mrf.mxu0
  %1887 = vmatprep.mubr.f32.mxu0 0.0
  %1888 = vmatmul.mubr.f32.gmra.mxu0 %v1800
  %v1889 = vpop.f32.mrf.mxu0
  %v1890 = vadd.f32 0.0, %v1889
  %v1891 = vpop.f32.mrf.mxu0
  %1892 = vmatprep.mubr.f32.mxu0 0.0
  %1893 = vmatmul.mubr.f32.gmra.mxu0 %v1803
  %v1894 = vpop.f32.mrf.mxu0
  %v1895 = vadd.f32 0.0, %v1894
  %v1896 = vpop.f32.mrf.mxu0
  %1897 = vmatprep.mubr.f32.mxu0 0.0
  %1898 = vmatmul.mubr.f32.gmra.mxu0 %v1806
  %v1899 = vpop.f32.mrf.mxu0
  %v1900 = vadd.f32 0.0, %v1899
  %v1901 = vpop.f32.mrf.mxu0
  %1902 = vdwg.mxu0
  %v1903 = vld [vmem:[%s43] sm:$0xff]
  %v1904 = vld [vmem:[%s43 + $0x8] sm:$0xff]
  %v1905 = vld [vmem:[%s43 + $0x10] sm:$0xff]
  %v1906 = vld [vmem:[%s43 + $0x18] sm:$0xff]
  %v1907 = vld [vmem:[%s43 + $0x20] sm:$0xff]
  %v1908 = vld [vmem:[%s43 + $0x28] sm:$0xff]
  %v1910 = vsel %vm276, %v1903, 0
  %v1913 = vsel %vm276, %v1904, 0
  %v1916 = vsel %vm276, %v1905, 0
  %v1919 = vsel %vm276, %v1906, 0
  %v1922 = vsel %vm276, %v1907, 0
  %v1925 = vsel %vm276, %v1908, 0
  %1927 = vmatprep.subr.mxu0 0.0
  %1928 = vmatpush1.msra.mxu0 0.0
  %1929 = vmatprep.subr.mxu0 0.0
  %1930 = vmatpush1.msra.mxu0 0.0
  %1931 = vmatprep.subr.mxu0 0.0
  %1932 = vmatpush1.msra.mxu0 0.0
  %1933 = vmatprep.subr.mxu0 0.0
  %1934 = vmatpush1.msra.mxu0 0.0
  %1935 = vmatprep.subr.mxu0 0.0
  %1936 = vmatpush1.msra.mxu0 0.0
  %1937 = vmatprep.subr.mxu0 0.0
  %1938 = vmatpush1.msra.mxu0 0.0
  %1939 = vmatprep.subr.mxu0 0.0
  %1940 = vmatpush1.msra.mxu0 0.0
  %1941 = vmatprep.subr.mxu0 0.0
  %1942 = vmatpush1.msra.mxu0 0.0
  %1943 = vmatprep.subr.mxu0 0.0
  %1944 = vmatpush1.msra.mxu0 0.0
  %1945 = vmatprep.subr.mxu0 0.0
  %1946 = vmatpush1.msra.mxu0 0.0
  %1947 = vmatprep.subr.mxu0 0.0
  %1948 = vmatpush1.msra.mxu0 %v1900
  %1949 = vmatprep.subr.mxu0 0.0
  %1950 = vmatpush1.msra.mxu0 %v1895
  %1951 = vmatprep.subr.mxu0 0.0
  %1952 = vmatpush1.msra.mxu0 %v1890
  %1953 = vmatprep.subr.mxu0 0.0
  %1954 = vmatpush1.msra.mxu0 %v1885
  %1955 = vmatprep.subr.mxu0 0.0
  %1956 = vmatpush1.msra.mxu0 %v1880
  %1957 = vmatprep.subr.mxu0 0.0
  %1958 = vmatpush1.msra.mxu0 %v1875
  %1959 = vmatprep.subr.mxu0 0.0
  %1960 = vmatpush2.msra.mxu0 0.0
  %1961 = vmatprep.subr.mxu0 0.0
  %1962 = vmatpush2.msra.mxu0 0.0
  %1963 = vmatprep.subr.mxu0 0.0
  %1964 = vmatpush2.msra.mxu0 0.0
  %1965 = vmatprep.subr.mxu0 0.0
  %1966 = vmatpush2.msra.mxu0 0.0
  %1967 = vmatprep.subr.mxu0 0.0
  %1968 = vmatpush2.msra.mxu0 0.0
  %1969 = vmatprep.subr.mxu0 0.0
  %1970 = vmatpush2.msra.mxu0 0.0
  %1971 = vmatprep.subr.mxu0 0.0
  %1972 = vmatpush2.msra.mxu0 0.0
  %1973 = vmatprep.subr.mxu0 0.0
  %1974 = vmatpush2.msra.mxu0 0.0
  %1975 = vmatprep.subr.mxu0 0.0
  %1976 = vmatpush2.msra.mxu0 0.0
  %1977 = vmatprep.subr.mxu0 0.0
  %1978 = vmatpush2.msra.mxu0 0.0
  %1979 = vmatprep.subr.mxu0 0.0
  %1980 = vmatpush2.msra.mxu0 0.0
  %1981 = vmatprep.subr.mxu0 0.0
  %1982 = vmatpush2.msra.mxu0 0.0
  %1983 = vmatprep.subr.mxu0 0.0
  %1984 = vmatpush2.msra.mxu0 0.0
  %1985 = vmatprep.subr.mxu0 0.0
  %1986 = vmatpush2.msra.mxu0 0.0
  %1987 = vmatprep.subr.mxu0 0.0
  %1988 = vmatpush2.msra.mxu0 0.0
  %1989 = vmatprep.subr.mxu0 0.0
  %1990 = vmatpush2.msra.mxu0 0.0
  %1991 = vmatprep.mubr.f32.mxu0 0.0
  %1992 = vmatmul.mubr.f32.gmra.mxu0 %v1910
  %v1993 = vpop.f32.mrf.mxu0
  %v1994 = vadd.f32 0.0, %v1993
  %v1995 = vpop.f32.mrf.mxu0
  %1996 = vmatprep.mubr.f32.mxu0 0.0
  %1997 = vmatmul.mubr.f32.gmra.mxu0 %v1913
  %v1998 = vpop.f32.mrf.mxu0
  %v1999 = vadd.f32 0.0, %v1998
  %v2000 = vpop.f32.mrf.mxu0
  %2001 = vmatprep.mubr.f32.mxu0 0.0
  %2002 = vmatmul.mubr.f32.gmra.mxu0 %v1916
  %v2003 = vpop.f32.mrf.mxu0
  %v2004 = vadd.f32 0.0, %v2003
  %v2005 = vpop.f32.mrf.mxu0
  %2006 = vmatprep.mubr.f32.mxu0 0.0
  %2007 = vmatmul.mubr.f32.gmra.mxu0 %v1919
  %v2008 = vpop.f32.mrf.mxu0
  %v2009 = vadd.f32 0.0, %v2008
  %v2010 = vpop.f32.mrf.mxu0
  %2011 = vmatprep.mubr.f32.mxu0 0.0
  %2012 = vmatmul.mubr.f32.gmra.mxu0 %v1922
  %v2013 = vpop.f32.mrf.mxu0
  %v2014 = vadd.f32 0.0, %v2013
  %v2015 = vpop.f32.mrf.mxu0
  %2016 = vmatprep.mubr.f32.mxu0 0.0
  %2017 = vmatmul.mubr.f32.gmra.mxu0 %v1925
  %v2018 = vpop.f32.mrf.mxu0
  %v2019 = vadd.f32 0.0, %v2018
  %v2020 = vpop.f32.mrf.mxu0
  %2021 = vdwg.mxu0
  %v2022 = vld [vmem:[%s47] sm:$0xff]
  %v2023 = vld [vmem:[%s47 + $0x8] sm:$0xff]
  %v2024 = vld [vmem:[%s47 + $0x10] sm:$0xff]
  %v2025 = vld [vmem:[%s47 + $0x18] sm:$0xff]
  %v2026 = vld [vmem:[%s47 + $0x20] sm:$0xff]
  %v2027 = vld [vmem:[%s47 + $0x28] sm:$0xff]
  %v2028 = vmul.f32 %v1994, %v2022
  %v2029 = vmul.f32 %v1999, %v2023
  %v2030 = vmul.f32 %v2004, %v2024
  %v2031 = vmul.f32 %v2009, %v2025
  %v2032 = vmul.f32 %v2014, %v2026
  %v2033 = vmul.f32 %v2019, %v2027
  %v2034 = vld [vmem:[%s49] sm:$0xff]
  %v2035 = vld [vmem:[%s49 + $0x8] sm:$0xff]
  %v2036 = vld [vmem:[%s49 + $0x10] sm:$0xff]
  %v2037 = vld [vmem:[%s49 + $0x18] sm:$0xff]
  %v2038 = vld [vmem:[%s49 + $0x20] sm:$0xff]
  %v2039 = vld [vmem:[%s49 + $0x28] sm:$0xff]
  %v2040 = vadd.f32 %v2028, %v2034
  %v2041 = vadd.f32 %v2029, %v2035
  %v2042 = vadd.f32 %v2030, %v2036
  %v2043 = vadd.f32 %v2031, %v2037
  %v2044 = vadd.f32 %v2032, %v2038
  %v2045 = vadd.f32 %v2033, %v2039
  %v2046 = vtanh.pop %v2040
  %v2047 = vtanh.pop %v2041
  %v2048 = vtanh.pop %v2042
  %v2049 = vtanh.pop %v2043
  %v2050 = vtanh.pop %v2044
  %v2051 = vtanh.pop %v2045
  %v2052 = vadd.f32 %v2046, %v1506
  %v2053 = vadd.f32 %v2047, %v1507
  %v2054 = vadd.f32 %v2048, %v1508
  %v2055 = vadd.f32 %v2049, %v1509
  %v2056 = vadd.f32 %v2050, %v1510
  %v2057 = vadd.f32 %v2051, %v1511
  %v2058 = vld [vmem:[%s61] sm:$0xff]
  %v2059 = vld [vmem:[%s61 + $0x8] sm:$0xff]
  %v2060 = vld [vmem:[%s61 + $0x10] sm:$0xff]
  %v2061 = vld [vmem:[%s61 + $0x18] sm:$0xff]
  %v2062 = vld [vmem:[%s61 + $0x20] sm:$0xff]
  %v2063 = vld [vmem:[%s61 + $0x28] sm:$0xff]
  %v2064 = vld [vmem:[%s61 + $0x30] sm:$0xff]
  %v2065 = vld [vmem:[%s61 + $0x38] sm:$0xff]
  %2066 = vmatprep.subr.mxu0 0.0
  %2067 = vmatpush1.msra.mxu0 0.0
  %2068 = vmatprep.subr.mxu0 0.0
  %2069 = vmatpush1.msra.mxu0 0.0
  %2070 = vmatprep.subr.mxu0 0.0
  %2071 = vmatpush1.msra.mxu0 0.0
  %2072 = vmatprep.subr.mxu0 0.0
  %2073 = vmatpush1.msra.mxu0 0.0
  %2074 = vmatprep.subr.mxu0 0.0
  %2075 = vmatpush1.msra.mxu0 0.0
  %2076 = vmatprep.subr.mxu0 0.0
  %2077 = vmatpush1.msra.mxu0 0.0
  %2078 = vmatprep.subr.mxu0 0.0
  %2079 = vmatpush1.msra.mxu0 0.0
  %2080 = vmatprep.subr.mxu0 0.0
  %2081 = vmatpush1.msra.mxu0 0.0
  %2082 = vmatprep.subr.mxu0 0.0
  %2083 = vmatpush1.msra.mxu0 %v2065
  %2084 = vmatprep.subr.mxu0 0.0
  %2085 = vmatpush1.msra.mxu0 %v2064
  %2086 = vmatprep.subr.mxu0 0.0
  %2087 = vmatpush1.msra.mxu0 %v2063
  %2088 = vmatprep.subr.mxu0 0.0
  %2089 = vmatpush1.msra.mxu0 %v2062
  %2090 = vmatprep.subr.mxu0 0.0
  %2091 = vmatpush1.msra.mxu0 %v2061
  %2092 = vmatprep.subr.mxu0 0.0
  %2093 = vmatpush1.msra.mxu0 %v2060
  %2094 = vmatprep.subr.mxu0 0.0
  %2095 = vmatpush1.msra.mxu0 %v2059
  %2096 = vmatprep.subr.mxu0 0.0
  %2097 = vmatpush1.msra.mxu0 %v2058
  %2098 = vmatprep.subr.mxu0 0.0
  %2099 = vmatpush2.msra.mxu0 0.0
  %2100 = vmatprep.subr.mxu0 0.0
  %2101 = vmatpush2.msra.mxu0 0.0
  %2102 = vmatprep.subr.mxu0 0.0
  %2103 = vmatpush2.msra.mxu0 0.0
  %2104 = vmatprep.subr.mxu0 0.0
  %2105 = vmatpush2.msra.mxu0 0.0
  %2106 = vmatprep.subr.mxu0 0.0
  %2107 = vmatpush2.msra.mxu0 0.0
  %2108 = vmatprep.subr.mxu0 0.0
  %2109 = vmatpush2.msra.mxu0 0.0
  %2110 = vmatprep.subr.mxu0 0.0
  %2111 = vmatpush2.msra.mxu0 0.0
  %2112 = vmatprep.subr.mxu0 0.0
  %2113 = vmatpush2.msra.mxu0 0.0
  %2114 = vmatprep.subr.mxu0 0.0
  %2115 = vmatpush2.msra.mxu0 0.0
  %2116 = vmatprep.subr.mxu0 0.0
  %2117 = vmatpush2.msra.mxu0 0.0
  %2118 = vmatprep.subr.mxu0 0.0
  %2119 = vmatpush2.msra.mxu0 0.0
  %2120 = vmatprep.subr.mxu0 0.0
  %2121 = vmatpush2.msra.mxu0 0.0
  %2122 = vmatprep.subr.mxu0 0.0
  %2123 = vmatpush2.msra.mxu0 0.0
  %2124 = vmatprep.subr.mxu0 0.0
  %2125 = vmatpush2.msra.mxu0 0.0
  %2126 = vmatprep.subr.mxu0 0.0
  %2127 = vmatpush2.msra.mxu0 0.0
  %2128 = vmatprep.subr.mxu0 0.0
  %2129 = vmatpush2.msra.mxu0 0.0
  %2130 = vmatprep.mubr.f32.mxu0 0.0
  %2131 = vmatmul.mubr.f32.gmra.mxu0 %v1257
  %v2132 = vpop.f32.mrf.mxu0
  %v2133 = vadd.f32 0.0, %v2132
  %v2134 = vpop.f32.mrf.mxu0
  %2135 = vmatprep.mubr.f32.mxu0 0.0
  %2136 = vmatmul.mubr.f32.gmra.mxu0 %v1260
  %v2137 = vpop.f32.mrf.mxu0
  %v2138 = vadd.f32 0.0, %v2137
  %v2139 = vpop.f32.mrf.mxu0
  %2140 = vmatprep.mubr.f32.mxu0 0.0
  %2141 = vmatmul.mubr.f32.gmra.mxu0 %v1263
  %v2142 = vpop.f32.mrf.mxu0
  %v2143 = vadd.f32 0.0, %v2142
  %v2144 = vpop.f32.mrf.mxu0
  %2145 = vmatprep.mubr.f32.mxu0 0.0
  %2146 = vmatmul.mubr.f32.gmra.mxu0 %v1266
  %v2147 = vpop.f32.mrf.mxu0
  %v2148 = vadd.f32 0.0, %v2147
  %v2149 = vpop.f32.mrf.mxu0
  %2150 = vmatprep.mubr.f32.mxu0 0.0
  %2151 = vmatmul.mubr.f32.gmra.mxu0 %v1269
  %v2152 = vpop.f32.mrf.mxu0
  %v2153 = vadd.f32 0.0, %v2152
  %v2154 = vpop.f32.mrf.mxu0
  %2155 = vmatprep.mubr.f32.mxu0 0.0
  %2156 = vmatmul.mubr.f32.gmra.mxu0 %v1272
  %v2157 = vpop.f32.mrf.mxu0
  %v2158 = vadd.f32 0.0, %v2157
  %v2159 = vpop.f32.mrf.mxu0
  %2160 = vdwg.mxu0
  %v2161 = vld [vmem:[%s59] sm:$0xff]
  %v2162 = vld [vmem:[%s59 + $0x8] sm:$0xff]
  %v2163 = vld [vmem:[%s59 + $0x10] sm:$0xff]
  %v2164 = vld [vmem:[%s59 + $0x18] sm:$0xff]
  %v2165 = vld [vmem:[%s59 + $0x20] sm:$0xff]
  %v2166 = vld [vmem:[%s59 + $0x28] sm:$0xff]
  %v2167 = vld [vmem:[%s63] sm:$0x1]
  %v2169 = vlaneseq
  %v2170 = vshrl.u32 %v2169, 7
  %v2171 = vsub.s32 0, %v2170
  %v2172 = vrot.slane %v2167, %v2171
  %v2175 = vsel %vm276, %v2161, 0
  %v2178 = vsel %vm276, %v2162, 0
  %v2181 = vsel %vm276, %v2163, 0
  %v2184 = vsel %vm276, %v2164, 0
  %v2187 = vsel %vm276, %v2165, 0
  %v2190 = vsel %vm276, %v2166, 0
  %2192 = vmatprep.subr.mxu0 0.0
  %2193 = vmatpush1.msra.mxu0 0.0
  %2194 = vmatprep.subr.mxu0 0.0
  %2195 = vmatpush1.msra.mxu0 0.0
  %2196 = vmatprep.subr.mxu0 0.0
  %2197 = vmatpush1.msra.mxu0 0.0
  %2198 = vmatprep.subr.mxu0 0.0
  %2199 = vmatpush1.msra.mxu0 0.0
  %2200 = vmatprep.subr.mxu0 0.0
  %2201 = vmatpush1.msra.mxu0 0.0
  %2202 = vmatprep.subr.mxu0 0.0
  %2203 = vmatpush1.msra.mxu0 0.0
  %2204 = vmatprep.subr.mxu0 0.0
  %2205 = vmatpush1.msra.mxu0 0.0
  %2206 = vmatprep.subr.mxu0 0.0
  %2207 = vmatpush1.msra.mxu0 0.0
  %2208 = vmatprep.subr.mxu0 0.0
  %2209 = vmatpush1.msra.mxu0 0.0
  %2210 = vmatprep.subr.mxu0 0.0
  %2211 = vmatpush1.msra.mxu0 0.0
  %2212 = vmatprep.subr.mxu0 0.0
  %2213 = vmatpush1.msra.mxu0 %v2158
  %2214 = vmatprep.subr.mxu0 0.0
  %2215 = vmatpush1.msra.mxu0 %v2153
  %2216 = vmatprep.subr.mxu0 0.0
  %2217 = vmatpush1.msra.mxu0 %v2148
  %2218 = vmatprep.subr.mxu0 0.0
  %2219 = vmatpush1.msra.mxu0 %v2143
  %2220 = vmatprep.subr.mxu0 0.0
  %2221 = vmatpush1.msra.mxu0 %v2138
  %2222 = vmatprep.subr.mxu0 0.0
  %2223 = vmatpush1.msra.mxu0 %v2133
  %2224 = vmatprep.subr.mxu0 0.0
  %2225 = vmatpush2.msra.mxu0 0.0
  %2226 = vmatprep.subr.mxu0 0.0
  %2227 = vmatpush2.msra.mxu0 0.0
  %2228 = vmatprep.subr.mxu0 0.0
  %2229 = vmatpush2.msra.mxu0 0.0
  %2230 = vmatprep.subr.mxu0 0.0
  %2231 = vmatpush2.msra.mxu0 0.0
  %2232 = vmatprep.subr.mxu0 0.0
  %2233 = vmatpush2.msra.mxu0 0.0
  %2234 = vmatprep.subr.mxu0 0.0
  %2235 = vmatpush2.msra.mxu0 0.0
  %2236 = vmatprep.subr.mxu0 0.0
  %2237 = vmatpush2.msra.mxu0 0.0
  %2238 = vmatprep.subr.mxu0 0.0
  %2239 = vmatpush2.msra.mxu0 0.0
  %2240 = vmatprep.subr.mxu0 0.0
  %2241 = vmatpush2.msra.mxu0 0.0
  %2242 = vmatprep.subr.mxu0 0.0
  %2243 = vmatpush2.msra.mxu0 0.0
  %2244 = vmatprep.subr.mxu0 0.0
  %2245 = vmatpush2.msra.mxu0 0.0
  %2246 = vmatprep.subr.mxu0 0.0
  %2247 = vmatpush2.msra.mxu0 0.0
  %2248 = vmatprep.subr.mxu0 0.0
  %2249 = vmatpush2.msra.mxu0 0.0
  %2250 = vmatprep.subr.mxu0 0.0
  %2251 = vmatpush2.msra.mxu0 0.0
  %2252 = vmatprep.subr.mxu0 0.0
  %2253 = vmatpush2.msra.mxu0 0.0
  %2254 = vmatprep.subr.mxu0 0.0
  %2255 = vmatpush2.msra.mxu0 0.0
  %2256 = vmatprep.mubr.f32.mxu0 0.0
  %2257 = vmatmul.mubr.f32.gmra.mxu0 %v2175
  %v2258 = vpop.f32.mrf.mxu0
  %v2259 = vadd.f32 %v2172, %v2258
  %v2260 = vpop.f32.mrf.mxu0
  %2261 = vmatprep.mubr.f32.mxu0 0.0
  %2262 = vmatmul.mubr.f32.gmra.mxu0 %v2178
  %v2263 = vpop.f32.mrf.mxu0
  %v2264 = vadd.f32 %v2172, %v2263
  %v2265 = vpop.f32.mrf.mxu0
  %2266 = vmatprep.mubr.f32.mxu0 0.0
  %2267 = vmatmul.mubr.f32.gmra.mxu0 %v2181
  %v2268 = vpop.f32.mrf.mxu0
  %v2269 = vadd.f32 %v2172, %v2268
  %v2270 = vpop.f32.mrf.mxu0
  %2271 = vmatprep.mubr.f32.mxu0 0.0
  %2272 = vmatmul.mubr.f32.gmra.mxu0 %v2184
  %v2273 = vpop.f32.mrf.mxu0
  %v2274 = vadd.f32 %v2172, %v2273
  %v2275 = vpop.f32.mrf.mxu0
  %2276 = vmatprep.mubr.f32.mxu0 0.0
  %2277 = vmatmul.mubr.f32.gmra.mxu0 %v2187
  %v2278 = vpop.f32.mrf.mxu0
  %v2279 = vadd.f32 %v2172, %v2278
  %v2280 = vpop.f32.mrf.mxu0
  %2281 = vmatprep.mubr.f32.mxu0 0.0
  %2282 = vmatmul.mubr.f32.gmra.mxu0 %v2190
  %v2283 = vpop.f32.mrf.mxu0
  %v2284 = vadd.f32 %v2172, %v2283
  %v2285 = vpop.f32.mrf.mxu0
  %2286 = vdwg.mxu0
  %2287 = vst.msk [vmem:[%s71] sm:$0xff] %vm156, %v2259
  %2288 = vst.msk [vmem:[%s71 + $0x8] sm:$0xff] %vm156, %v2264
  %2289 = vst.msk [vmem:[%s71 + $0x10] sm:$0xff] %vm156, %v2269
  %2290 = vst.msk [vmem:[%s71 + $0x18] sm:$0xff] %vm156, %v2274
  %2291 = vst.msk [vmem:[%s71 + $0x20] sm:$0xff] %vm156, %v2279
  %2292 = vst.msk [vmem:[%s71 + $0x28] sm:$0xff] %vm156, %v2284
  %v2293 = vld [vmem:[%s67] sm:$0xff]
  %v2294 = vld [vmem:[%s67 + $0x8] sm:$0xff]
  %v2295 = vld [vmem:[%s67 + $0x10] sm:$0xff]
  %v2296 = vld [vmem:[%s67 + $0x18] sm:$0xff]
  %v2297 = vld [vmem:[%s67 + $0x20] sm:$0xff]
  %v2298 = vld [vmem:[%s67 + $0x28] sm:$0xff]
  %v2299 = vld [vmem:[%s67 + $0x30] sm:$0xff]
  %v2300 = vld [vmem:[%s67 + $0x38] sm:$0xff]
  %v2302 = vsel %vm701, %v2052, 0
  %v2305 = vsel %vm701, %v2053, 0
  %v2308 = vsel %vm701, %v2054, 0
  %v2311 = vsel %vm701, %v2055, 0
  %v2314 = vsel %vm701, %v2056, 0
  %v2317 = vsel %vm701, %v2057, 0
  %2319 = vmatprep.subr.mxu0 0.0
  %2320 = vmatpush1.msra.mxu0 0.0
  %2321 = vmatprep.subr.mxu0 0.0
  %2322 = vmatpush1.msra.mxu0 0.0
  %2323 = vmatprep.subr.mxu0 0.0
  %2324 = vmatpush1.msra.mxu0 0.0
  %2325 = vmatprep.subr.mxu0 0.0
  %2326 = vmatpush1.msra.mxu0 0.0
  %2327 = vmatprep.subr.mxu0 0.0
  %2328 = vmatpush1.msra.mxu0 0.0
  %2329 = vmatprep.subr.mxu0 0.0
  %2330 = vmatpush1.msra.mxu0 0.0
  %2331 = vmatprep.subr.mxu0 0.0
  %2332 = vmatpush1.msra.mxu0 0.0
  %2333 = vmatprep.subr.mxu0 0.0
  %2334 = vmatpush1.msra.mxu0 0.0
  %2335 = vmatprep.subr.mxu0 0.0
  %2336 = vmatpush1.msra.mxu0 %v2300
  %2337 = vmatprep.subr.mxu0 0.0
  %2338 = vmatpush1.msra.mxu0 %v2299
  %2339 = vmatprep.subr.mxu0 0.0
  %2340 = vmatpush1.msra.mxu0 %v2298
  %2341 = vmatprep.subr.mxu0 0.0
  %2342 = vmatpush1.msra.mxu0 %v2297
  %2343 = vmatprep.subr.mxu0 0.0
  %2344 = vmatpush1.msra.mxu0 %v2296
  %2345 = vmatprep.subr.mxu0 0.0
  %2346 = vmatpush1.msra.mxu0 %v2295
  %2347 = vmatprep.subr.mxu0 0.0
  %2348 = vmatpush1.msra.mxu0 %v2294
  %2349 = vmatprep.subr.mxu0 0.0
  %2350 = vmatpush1.msra.mxu0 %v2293
  %2351 = vmatprep.subr.mxu0 0.0
  %2352 = vmatpush2.msra.mxu0 0.0
  %2353 = vmatprep.subr.mxu0 0.0
  %2354 = vmatpush2.msra.mxu0 0.0
  %2355 = vmatprep.subr.mxu0 0.0
  %2356 = vmatpush2.msra.mxu0 0.0
  %2357 = vmatprep.subr.mxu0 0.0
  %2358 = vmatpush2.msra.mxu0 0.0
  %2359 = vmatprep.subr.mxu0 0.0
  %2360 = vmatpush2.msra.mxu0 0.0
  %2361 = vmatprep.subr.mxu0 0.0
  %2362 = vmatpush2.msra.mxu0 0.0
  %2363 = vmatprep.subr.mxu0 0.0
  %2364 = vmatpush2.msra.mxu0 0.0
  %2365 = vmatprep.subr.mxu0 0.0
  %2366 = vmatpush2.msra.mxu0 0.0
  %2367 = vmatprep.subr.mxu0 0.0
  %2368 = vmatpush2.msra.mxu0 0.0
  %2369 = vmatprep.subr.mxu0 0.0
  %2370 = vmatpush2.msra.mxu0 0.0
  %2371 = vmatprep.subr.mxu0 0.0
  %2372 = vmatpush2.msra.mxu0 0.0
  %2373 = vmatprep.subr.mxu0 0.0
  %2374 = vmatpush2.msra.mxu0 0.0
  %2375 = vmatprep.subr.mxu0 0.0
  %2376 = vmatpush2.msra.mxu0 0.0
  %2377 = vmatprep.subr.mxu0 0.0
  %2378 = vmatpush2.msra.mxu0 0.0
  %2379 = vmatprep.subr.mxu0 0.0
  %2380 = vmatpush2.msra.mxu0 0.0
  %2381 = vmatprep.subr.mxu0 0.0
  %2382 = vmatpush2.msra.mxu0 0.0
  %2383 = vmatprep.mubr.f32.mxu0 0.0
  %2384 = vmatmul.mubr.f32.gmra.mxu0 %v2302
  %v2385 = vpop.f32.mrf.mxu0
  %v2386 = vadd.f32 0.0, %v2385
  %v2387 = vpop.f32.mrf.mxu0
  %2388 = vmatprep.mubr.f32.mxu0 0.0
  %2389 = vmatmul.mubr.f32.gmra.mxu0 %v2305
  %v2390 = vpop.f32.mrf.mxu0
  %v2391 = vadd.f32 0.0, %v2390
  %v2392 = vpop.f32.mrf.mxu0
  %2393 = vmatprep.mubr.f32.mxu0 0.0
  %2394 = vmatmul.mubr.f32.gmra.mxu0 %v2308
  %v2395 = vpop.f32.mrf.mxu0
  %v2396 = vadd.f32 0.0, %v2395
  %v2397 = vpop.f32.mrf.mxu0
  %2398 = vmatprep.mubr.f32.mxu0 0.0
  %2399 = vmatmul.mubr.f32.gmra.mxu0 %v2311
  %v2400 = vpop.f32.mrf.mxu0
  %v2401 = vadd.f32 0.0, %v2400
  %v2402 = vpop.f32.mrf.mxu0
  %2403 = vmatprep.mubr.f32.mxu0 0.0
  %2404 = vmatmul.mubr.f32.gmra.mxu0 %v2314
  %v2405 = vpop.f32.mrf.mxu0
  %v2406 = vadd.f32 0.0, %v2405
  %v2407 = vpop.f32.mrf.mxu0
  %2408 = vmatprep.mubr.f32.mxu0 0.0
  %2409 = vmatmul.mubr.f32.gmra.mxu0 %v2317
  %v2410 = vpop.f32.mrf.mxu0
  %v2411 = vadd.f32 0.0, %v2410
  %v2412 = vpop.f32.mrf.mxu0
  %2413 = vdwg.mxu0
  %v2414 = vld [vmem:[%s65] sm:$0xff]
  %v2415 = vld [vmem:[%s65 + $0x8] sm:$0xff]
  %v2416 = vld [vmem:[%s65 + $0x10] sm:$0xff]
  %v2417 = vld [vmem:[%s65 + $0x18] sm:$0xff]
  %v2418 = vld [vmem:[%s65 + $0x20] sm:$0xff]
  %v2419 = vld [vmem:[%s65 + $0x28] sm:$0xff]
  %v2420 = vld [vmem:[%s69] sm:$0x1]
  %v2422 = vlaneseq
  %v2423 = vshrl.u32 %v2422, 7
  %v2424 = vsub.s32 0, %v2423
  %v2425 = vrot.slane %v2420, %v2424
  %v2428 = vsel %vm276, %v2414, 0
  %v2431 = vsel %vm276, %v2415, 0
  %v2434 = vsel %vm276, %v2416, 0
  %v2437 = vsel %vm276, %v2417, 0
  %v2440 = vsel %vm276, %v2418, 0
  %v2443 = vsel %vm276, %v2419, 0
  %2445 = vmatprep.subr.mxu0 0.0
  %2446 = vmatpush1.msra.mxu0 0.0
  %2447 = vmatprep.subr.mxu0 0.0
  %2448 = vmatpush1.msra.mxu0 0.0
  %2449 = vmatprep.subr.mxu0 0.0
  %2450 = vmatpush1.msra.mxu0 0.0
  %2451 = vmatprep.subr.mxu0 0.0
  %2452 = vmatpush1.msra.mxu0 0.0
  %2453 = vmatprep.subr.mxu0 0.0
  %2454 = vmatpush1.msra.mxu0 0.0
  %2455 = vmatprep.subr.mxu0 0.0
  %2456 = vmatpush1.msra.mxu0 0.0
  %2457 = vmatprep.subr.mxu0 0.0
  %2458 = vmatpush1.msra.mxu0 0.0
  %2459 = vmatprep.subr.mxu0 0.0
  %2460 = vmatpush1.msra.mxu0 0.0
  %2461 = vmatprep.subr.mxu0 0.0
  %2462 = vmatpush1.msra.mxu0 0.0
  %2463 = vmatprep.subr.mxu0 0.0
  %2464 = vmatpush1.msra.mxu0 0.0
  %2465 = vmatprep.subr.mxu0 0.0
  %2466 = vmatpush1.msra.mxu0 %v2411
  %2467 = vmatprep.subr.mxu0 0.0
  %2468 = vmatpush1.msra.mxu0 %v2406
  %2469 = vmatprep.subr.mxu0 0.0
  %2470 = vmatpush1.msra.mxu0 %v2401
  %2471 = vmatprep.subr.mxu0 0.0
  %2472 = vmatpush1.msra.mxu0 %v2396
  %2473 = vmatprep.subr.mxu0 0.0
  %2474 = vmatpush1.msra.mxu0 %v2391
  %2475 = vmatprep.subr.mxu0 0.0
  %2476 = vmatpush1.msra.mxu0 %v2386
  %2477 = vmatprep.subr.mxu0 0.0
  %2478 = vmatpush2.msra.mxu0 0.0
  %2479 = vmatprep.subr.mxu0 0.0
  %2480 = vmatpush2.msra.mxu0 0.0
  %2481 = vmatprep.subr.mxu0 0.0
  %2482 = vmatpush2.msra.mxu0 0.0
  %2483 = vmatprep.subr.mxu0 0.0
  %2484 = vmatpush2.msra.mxu0 0.0
  %2485 = vmatprep.subr.mxu0 0.0
  %2486 = vmatpush2.msra.mxu0 0.0
  %2487 = vmatprep.subr.mxu0 0.0
  %2488 = vmatpush2.msra.mxu0 0.0
  %2489 = vmatprep.subr.mxu0 0.0
  %2490 = vmatpush2.msra.mxu0 0.0
  %2491 = vmatprep.subr.mxu0 0.0
  %2492 = vmatpush2.msra.mxu0 0.0
  %2493 = vmatprep.subr.mxu0 0.0
  %2494 = vmatpush2.msra.mxu0 0.0
  %2495 = vmatprep.subr.mxu0 0.0
  %2496 = vmatpush2.msra.mxu0 0.0
  %2497 = vmatprep.subr.mxu0 0.0
  %2498 = vmatpush2.msra.mxu0 0.0
  %2499 = vmatprep.subr.mxu0 0.0
  %2500 = vmatpush2.msra.mxu0 0.0
  %2501 = vmatprep.subr.mxu0 0.0
  %2502 = vmatpush2.msra.mxu0 0.0
  %2503 = vmatprep.subr.mxu0 0.0
  %2504 = vmatpush2.msra.mxu0 0.0
  %2505 = vmatprep.subr.mxu0 0.0
  %2506 = vmatpush2.msra.mxu0 0.0
  %2507 = vmatprep.subr.mxu0 0.0
  %2508 = vmatpush2.msra.mxu0 0.0
  %2509 = vmatprep.mubr.f32.mxu0 0.0
  %2510 = vmatmul.mubr.f32.gmra.mxu0 %v2428
  %v2511 = vpop.f32.mrf.mxu0
  %v2512 = vadd.f32 %v2425, %v2511
  %v2513 = vpop.f32.mrf.mxu0
  %2514 = vmatprep.mubr.f32.mxu0 0.0
  %2515 = vmatmul.mubr.f32.gmra.mxu0 %v2431
  %v2516 = vpop.f32.mrf.mxu0
  %v2517 = vadd.f32 %v2425, %v2516
  %v2518 = vpop.f32.mrf.mxu0
  %2519 = vmatprep.mubr.f32.mxu0 0.0
  %2520 = vmatmul.mubr.f32.gmra.mxu0 %v2434
  %v2521 = vpop.f32.mrf.mxu0
  %v2522 = vadd.f32 %v2425, %v2521
  %v2523 = vpop.f32.mrf.mxu0
  %2524 = vmatprep.mubr.f32.mxu0 0.0
  %2525 = vmatmul.mubr.f32.gmra.mxu0 %v2437
  %v2526 = vpop.f32.mrf.mxu0
  %v2527 = vadd.f32 %v2425, %v2526
  %v2528 = vpop.f32.mrf.mxu0
  %2529 = vmatprep.mubr.f32.mxu0 0.0
  %2530 = vmatmul.mubr.f32.gmra.mxu0 %v2440
  %v2531 = vpop.f32.mrf.mxu0
  %v2532 = vadd.f32 %v2425, %v2531
  %v2533 = vpop.f32.mrf.mxu0
  %2534 = vmatprep.mubr.f32.mxu0 0.0
  %2535 = vmatmul.mubr.f32.gmra.mxu0 %v2443
  %v2536 = vpop.f32.mrf.mxu0
  %v2537 = vadd.f32 %v2425, %v2536
  %v2538 = vpop.f32.mrf.mxu0
  %2539 = vdwg.mxu0
  %s2540 = scalar_lea.vmem %s71, 48
  %2541 = vst.msk [vmem:[%s2540] sm:$0xff] %vm156, %v2512
  %2542 = vst.msk [vmem:[%s2540 + $0x8] sm:$0xff] %vm156, %v2517
  %2543 = vst.msk [vmem:[%s2540 + $0x10] sm:$0xff] %vm156, %v2522
  %2544 = vst.msk [vmem:[%s2540 + $0x18] sm:$0xff] %vm156, %v2527
  %2545 = vst.msk [vmem:[%s2540 + $0x20] sm:$0xff] %vm156, %v2532
  %2546 = vst.msk [vmem:[%s2540 + $0x28] sm:$0xff] %vm156, %v2537
  // Predicated region
  $region142: #{gcs_n_nonres_forward.1} parent=0 // pred_check
    _
  $region143: #{gcs_n_nonres_forward.1} parent=0 // pred_check_branch
    %2548 = sbr.rel (0) target = $region145
  $region144: #{gcs_n_nonres_forward.1} parent=0 // pred_region
    _
  $region145: #{gcs_n_nonres_forward.1} parent=0 // pred_fallthru
    _
  // Predicated region
  $region146: #{gcs_n_nonres_forward.1} parent=0 // pred_check
    _
  $region147: #{gcs_n_nonres_forward.1} parent=0 // pred_check_branch
    %2550 = sbr.rel (0) target = $region149
  $region148: #{gcs_n_nonres_forward.1} parent=0 // pred_region
    _
  $region149: #{gcs_n_nonres_forward.1} parent=0 // pred_fallthru
    _

</llo_original>
